<compile_context>
chip_gen: v7x
topology: tpu7x:2x2x1
jax: 0.10.0
libtpu: 0.0.40
codegen_flags: <defaults>
</compile_context>

<pallas_src>
import jax
import jax.numpy as jnp
from jax import lax
from jax.experimental import pallas as pl
from jax.experimental.pallas import tpu as pltpu

KS = 3        # depthwise kernel size
STRIDE = 1    # stride == 1 -> shortcut branch active
EPS = 1e-5


def _probe_roll_is_numpy():
    """Probe pltpu.roll's rotation convention once, at import time (always
    eager, so jit-tracing of mobile_forward never sees a concretization).
    numpy convention means out[i] = in[i - shift].  Falls back to the numpy
    convention if the tiny probe kernel cannot run for any reason."""
    try:
        def probe(o_ref):
            idx = lax.broadcasted_iota(jnp.int32, (8, 128), 1).astype(jnp.float32)
            o_ref[...] = pltpu.roll(idx, 1, axis=1)

        r = pl.pallas_call(
            probe, out_shape=jax.ShapeDtypeStruct((8, 128), jnp.float32))()
        return bool(float(r[0, 1]) == 0.0)
    except Exception:                      # conservative fallback
        return True


_ROLL_IS_NUMPY = _probe_roll_is_numpy()


# ----------------------------------------------------------------------------
# Wrapper (matches Mobile.forward(x, z); z is accepted but unused by forward).
# Takes / returns NCHW like the PyTorch module; all layout plumbing (transpose
# + lane-dense packing + BN/weight folding) happens wrapper-side in XLA.
# ----------------------------------------------------------------------------
def mobile_forward(x_nchw, z, params):
    del z  # Mobile.forward never reads z
    N, INP, H, W = x_nchw.shape
    HID = params["w1"].shape[1]
    OUT = params["w3"].shape[1]
    NH, WI, WH, WO = N * H, W * INP, W * HID, W * OUT
    f32, bf16 = jnp.float32, jnp.bfloat16

    # ---- fold BN scales into the conv weights (only bias adds stay in-kernel)
    w1f = params["w1"] * params["bn1_s"][None, :]            # (INP, HID)
    wscf = params["wsc"] * params["bnsc_s"][None, :]         # (INP, OUT)
    w3f = params["w3"] * params["bn3_s"][None, :]            # (HID, OUT)

    # ---- block-diagonal "packed" 1x1 convs acting directly on (rows, W*C)
    #      layout; stored bf16 (MXU default precision rounds to bf16 anyway).
    eye_w = jnp.eye(W, dtype=f32)
    wcat = jnp.concatenate(                                  # (W*INP, W*HID+W*OUT)
        [jnp.kron(eye_w, w1f), jnp.kron(eye_w, wscf)], axis=1).astype(bf16)
    w3big = jnp.kron(eye_w, w3f).astype(bf16)                # (W*HID, W*OUT)

    # ---- packed depthwise taps (BN2 scale folded, W-edge columns zeroed so
    #      the lane-roll wrap-around contributes exactly 0)
    wdw_s = params["wdw"] * params["bn2_s"][None, :]         # (KS*KS, HID)
    taps = []
    for ky in range(KS):
        for kx in range(KS):
            t = jnp.tile(wdw_s[ky * KS + kx], W)             # (W*HID,)
            if kx == 0:
                t = t.at[:HID].set(0.0)        # no x-1 neighbour at x == 0
            if kx == KS - 1:
                t = t.at[-HID:].set(0.0)       # no x+1 neighbour at x == W-1
            taps.append(t)

    # ---- merged per-lane constants: row0 = BN1 bias, row1 = BN2 bias, 2..10 taps
    consts = jnp.stack([jnp.tile(params["bn1_b"], W),
                        jnp.tile(params["bn2_b"], W)] + taps)        # (11, W*HID)
    boutp = jnp.tile(params["bn3_b"] + params["bnsc_b"], W).reshape(1, WO)

    # ---- row masks killing wrap / cross-batch rows of the +/-1 sublane rolls
    y_idx = jnp.arange(NH) % H
    mask_ym = (y_idx != 0).astype(f32).reshape(NH, 1)        # zero where y == 0
    mask_yp = (y_idx != H - 1).astype(f32).reshape(NH, 1)    # zero where y == H-1

    # ---- static roll amounts for the probed convention
    if _ROLL_IS_NUMPY:
        sh_xm, sh_xp = HID, WH - HID          # lane rolls: x-1 / x+1 neighbour
        sh_ym, sh_yp = 1, NH - 1              # sublane rolls: y-1 / y+1 neighbour
    else:
        sh_xm, sh_xp = WH - HID, HID
        sh_ym, sh_yp = NH - 1, 1

    # ---- NCHW -> lane-dense packed (N*H, W*INP); batch folded into matmul rows
    xp = jnp.transpose(x_nchw, (0, 2, 3, 1)).reshape(NH, WI)

    def kernel(x_ref, wcat_ref, w3_ref, c_ref, bout_ref, mym_ref, myp_ref, o_ref):
        def tap(i):                                   # depthwise tap row i
            return c_ref[2 + i:3 + i, :]

        # conv1 + shortcut fused into ONE block-diagonal MXU matmul (bf16 in,
        # f32 accumulate).
        x = x_ref[...].astype(bf16)                           # (NH, W*INP)
        res = jnp.dot(x, wcat_ref[...], preferred_element_type=f32)
        h = jnp.clip(res[:, :WH] + c_ref[0:1, :], 0.0, 6.0)   # (NH, W*HID)
        sc = res[:, WH:]                                      # (NH, W*OUT)

        # depthwise 3x3 (stride 1, pad 1), all on VPU/XLU (no MXU):
        #   H +/- 1 : sublane rolls, edge/cross-batch rows zeroed by row masks
        #   W +/- 1 : lane rolls, wrap killed by zeroed edge taps
        acc = None
        for ky in range(KS):
            if ky == 0:
                r = pltpu.roll(h, sh_ym, axis=0) * mym_ref[...]   # h[y-1]
            elif ky == 1:
                r = h                                             # h[y]
            else:
                r = pltpu.roll(h, sh_yp, axis=0) * myp_ref[...]   # h[y+1]
            r_xm = pltpu.roll(r, sh_xm, axis=1)                   # r[y, x-1, c]
            r_xp = pltpu.roll(r, sh_xp, axis=1)                   # r[y, x+1, c]
            term = (r_xm * tap(KS * ky)
                    + r * tap(KS * ky + 1)
                    + r_xp * tap(KS * ky + 2))
            acc = term if acc is None else acc + term
        h2 = jnp.clip(acc + c_ref[1:2, :], 0.0, 6.0)

        # conv3 (block-diagonal packed) + residual shortcut + folded BN biases
        y = jnp.dot(h2.astype(bf16), w3_ref[...], preferred_element_type=f32)
        o_ref[...] = (y + sc + bout_ref[...]).astype(o_ref.dtype)  # (NH, 128)

    cost = pl.CostEstimate(
        flops=2 * NH * WI * (WH + WO) + 2 * NH * WH * WO + 2 * KS * KS * NH * WH,
        transcendentals=0,
        bytes_accessed=(xp.size * 4 + wcat.size * 2 + w3big.size * 2
                        + consts.size * 4 + boutp.size * 4
                        + mask_ym.size * 4 + mask_yp.size * 4 + NH * WO * 4))

    def full(a):
        return pl.BlockSpec(a.shape, lambda: (0,) * a.ndim)

    out_p = pl.pallas_call(
        kernel,
        out_shape=jax.ShapeDtypeStruct((NH, WO), f32),
        in_specs=[full(xp), full(wcat), full(w3big), full(consts),
                  full(boutp), full(mask_ym), full(mask_yp)],
        out_specs=pl.BlockSpec((NH, WO), lambda: (0, 0)),
        cost_estimate=cost,
    )(xp, wcat, w3big, consts, boutp, mask_ym, mask_yp)

    # packed (N*H, W*OUT) -> NCHW (layout plumbing, outside the kernel)
    return jnp.transpose(out_p.reshape(N, H, W, OUT), (0, 3, 1, 2))


# ----------------------------------------------------------------------------
# Pure-JAX reference mirroring the PyTorch NCHW module (full precision).
# ----------------------------------------------------------------------------
def ref_forward_nchw(x, p, hid):
    dn = ("NCHW", "OIHW", "NCHW")
    prec = lax.Precision.HIGHEST

    def bn(y, s, b):
        return y * s.reshape(1, -1, 1, 1) + b.reshape(1, -1, 1, 1)

    h = lax.conv_general_dilated(x, p["w1_oihw"], (1, 1), "VALID",
                                 dimension_numbers=dn, precision=prec)
    h = jnp.clip(bn(h, p["bn1_s"], p["bn1_b"]), 0.0, 6.0)
    h = lax.conv_general_dilated(h, p["wdw_oihw"], (STRIDE, STRIDE),
                                 [(KS // 2, KS // 2)] * 2,
                                 feature_group_count=hid,
                                 dimension_numbers=dn, precision=prec)
    h = jnp.clip(bn(h, p["bn2_s"], p["bn2_b"]), 0.0, 6.0)
    h = lax.conv_general_dilated(h, p["w3_oihw"], (1, 1), "VALID",
                                 dimension_numbers=dn, precision=prec)
    h = bn(h, p["bn3_s"], p["bn3_b"])
    sc = lax.conv_general_dilated(x, p["wsc_oihw"], (1, 1), "VALID",
                                  dimension_numbers=dn, precision=prec)
    sc = bn(sc, p["bnsc_s"], p["bnsc_b"])
    return h + sc


# ----------------------------------------------------------------------------
def _make_bn(key, c):
    kg, kb, km, kv = jax.random.split(key, 4)
    gamma = 1.0 + 0.1 * jax.random.normal(kg, (c,), jnp.float32)
    beta = 0.1 * jax.random.normal(kb, (c,), jnp.float32)
    mean = 0.1 * jax.random.normal(km, (c,), jnp.float32)
    var = jnp.abs(1.0 + 0.1 * jax.random.normal(kv, (c,), jnp.float32))
    scale = gamma / jnp.sqrt(var + EPS)
    bias = beta - mean * scale
    return scale, bias


if __name__ == "__main__":
    # Module config: Mobile(ks=3, inp=4, hid=32, out=8, se=None, stride=1, dim=32)
    N, H, W = 2, 16, 16
    INP, HID, OUT = 4, 32, 8
    M_TOK, DIM = 6, 32

    key = jax.random.PRNGKey(0)
    (kx, kz, kw1, kdw, kw3, ksc, kb1, kb2, kb3, kbsc) = jax.random.split(key, 10)

    x_nchw = jax.random.normal(kx, (N, INP, H, W), jnp.float32)
    z_tok = jax.random.normal(kz, (N, M_TOK, DIM), jnp.float32)   # unused in forward

    w1 = 0.2 * jax.random.normal(kw1, (INP, HID), jnp.float32)    # conv1 (inp -> hid)
    wdw = 0.2 * jax.random.normal(kdw, (KS * KS, HID), jnp.float32)  # depthwise taps
    w3 = 0.2 * jax.random.normal(kw3, (HID, OUT), jnp.float32)    # conv3 (hid -> out)
    wsc = 0.2 * jax.random.normal(ksc, (INP, OUT), jnp.float32)   # shortcut conv

    bn1_s, bn1_b = _make_bn(kb1, HID)
    bn2_s, bn2_b = _make_bn(kb2, HID)
    bn3_s, bn3_b = _make_bn(kb3, OUT)
    bnsc_s, bnsc_b = _make_bn(kbsc, OUT)

    kernel_params = dict(w1=w1, wdw=wdw, w3=w3, wsc=wsc,
                         bn1_s=bn1_s, bn1_b=bn1_b, bn2_s=bn2_s, bn2_b=bn2_b,
                         bn3_s=bn3_s, bn3_b=bn3_b, bnsc_s=bnsc_s, bnsc_b=bnsc_b)

    ref_params = dict(
        w1_oihw=w1.T.reshape(HID, INP, 1, 1),
        wdw_oihw=wdw.T.reshape(HID, 1, KS, KS),
        w3_oihw=w3.T.reshape(OUT, HID, 1, 1),
        wsc_oihw=wsc.T.reshape(OUT, INP, 1, 1),
        bn1_s=bn1_s, bn1_b=bn1_b, bn2_s=bn2_s, bn2_b=bn2_b,
        bn3_s=bn3_s, bn3_b=bn3_b, bnsc_s=bnsc_s, bnsc_b=bnsc_b)

    out_nchw = mobile_forward(x_nchw, z_tok, kernel_params)
    out_nchw = jax.block_until_ready(out_nchw)

    ref = ref_forward_nchw(x_nchw, ref_params, HID)
    max_err = float(jnp.max(jnp.abs(out_nchw - ref)))
    # The kernel runs both 1x1 convs on the MXU with bf16 operands (f32
    # accumulation) while the reference is full precision, so allow
    # bf16-rounding-level differences.  Structural bugs (wrong tap / shift /
    # mask / BN fold) would be orders of magnitude larger.
    assert max_err < 5e-2, f"mismatch vs reference: max abs err = {max_err}"

    print("KERNEL_OK")
</pallas_src>

<mosaic_0001>
module attributes {stable_mosaic.version = 11 : i64} {
  func.func @kernel(%arg0: memref<32x64xf32, #tpu.memory_space<vmem>>, %arg1: memref<64x640xbf16, #tpu.memory_space<vmem>>, %arg2: memref<512x128xbf16, #tpu.memory_space<vmem>>, %arg3: memref<11x512xf32, #tpu.memory_space<vmem>>, %arg4: memref<1x128xf32, #tpu.memory_space<vmem>>, %arg5: memref<32x1xf32, #tpu.memory_space<vmem>>, %arg6: memref<32x1xf32, #tpu.memory_space<vmem>>, %arg7: memref<32x128xf32, #tpu.memory_space<vmem>>) attributes {dimension_semantics = [], scalar_prefetch = 0 : i64, scratch_operands = 0 : i64, tpu.core_type = #tpu.core_type<tc>} {
    %c0 = arith.constant 0 : index
    %c0_0 = arith.constant 0 : index
    %0 = vector.load %arg0[%c0, %c0_0] : memref<32x64xf32, #tpu.memory_space<vmem>>, vector<32x64xf32>
    %1 = arith.truncf %0 : vector<32x64xf32> to vector<32x64xbf16>
    %c0_1 = arith.constant 0 : index
    %c0_2 = arith.constant 0 : index
    %2 = vector.load %arg1[%c0_1, %c0_2] : memref<64x640xbf16, #tpu.memory_space<vmem>>, vector<64x640xbf16>
    %cst = arith.constant dense<0.000000e+00> : vector<32x640xf32>
    %3 = tpu.matmul %1, %2, %cst {dimension_numbers = #tpu.dot_dimension_numbers<[1], [0], [0], [1], [0, 0, 1, 1], [], []>} : vector<32x64xbf16>, vector<64x640xbf16>, vector<32x640xf32> -> vector<32x640xf32>
    %4 = vector.extract_strided_slice %3 {offsets = [0, 0], sizes = [32, 512], strides = [1, 1]} : vector<32x640xf32> to vector<32x512xf32>
    %c0_3 = arith.constant 0 : index
    %c0_4 = arith.constant 0 : index
    %5 = vector.load %arg3[%c0_3, %c0_4] : memref<11x512xf32, #tpu.memory_space<vmem>>, vector<1x512xf32>
    %6 = vector.broadcast %5 : vector<1x512xf32> to vector<32x512xf32>
    %7 = arith.addf %4, %6 : vector<32x512xf32>
    %cst_5 = arith.constant 0.000000e+00 : f32
    %cst_6 = arith.constant 6.000000e+00 : f32
    %8 = vector.broadcast %cst_5 : f32 to vector<32x512xf32>
    %9 = arith.maximumf %8, %7 : vector<32x512xf32>
    %10 = vector.broadcast %cst_6 : f32 to vector<32x512xf32>
    %11 = arith.minimumf %10, %9 : vector<32x512xf32>
    %12 = vector.extract_strided_slice %3 {offsets = [0, 512], sizes = [32, 128], strides = [1, 1]} : vector<32x640xf32> to vector<32x128xf32>
    %c1_i32 = arith.constant 1 : i32
    %13 = tpu.dynamic_rotate %11 by %c1_i32 dim 0 : vector<32x512xf32>, i32 -> vector<32x512xf32>
    %c0_7 = arith.constant 0 : index
    %c0_8 = arith.constant 0 : index
    %14 = vector.load %arg5[%c0_7, %c0_8] : memref<32x1xf32, #tpu.memory_space<vmem>>, vector<32x1xf32>
    %15 = vector.broadcast %14 : vector<32x1xf32> to vector<32x512xf32>
    %16 = arith.mulf %13, %15 : vector<32x512xf32>
    %c32_i32 = arith.constant 32 : i32
    %17 = tpu.dynamic_rotate %16 by %c32_i32 dim 1 : vector<32x512xf32>, i32 -> vector<32x512xf32>
    %c480_i32 = arith.constant 480 : i32
    %18 = tpu.dynamic_rotate %16 by %c480_i32 dim 1 : vector<32x512xf32>, i32 -> vector<32x512xf32>
    %c2 = arith.constant 2 : index
    %c0_9 = arith.constant 0 : index
    %19 = vector.load %arg3[%c2, %c0_9] : memref<11x512xf32, #tpu.memory_space<vmem>>, vector<1x512xf32>
    %20 = vector.broadcast %19 : vector<1x512xf32> to vector<32x512xf32>
    %21 = arith.mulf %17, %20 : vector<32x512xf32>
    %c3 = arith.constant 3 : index
    %c0_10 = arith.constant 0 : index
    %22 = vector.load %arg3[%c3, %c0_10] : memref<11x512xf32, #tpu.memory_space<vmem>>, vector<1x512xf32>
    %23 = vector.broadcast %22 : vector<1x512xf32> to vector<32x512xf32>
    %24 = arith.mulf %16, %23 : vector<32x512xf32>
    %25 = arith.addf %21, %24 : vector<32x512xf32>
    %c4 = arith.constant 4 : index
    %c0_11 = arith.constant 0 : index
    %26 = vector.load %arg3[%c4, %c0_11] : memref<11x512xf32, #tpu.memory_space<vmem>>, vector<1x512xf32>
    %27 = vector.broadcast %26 : vector<1x512xf32> to vector<32x512xf32>
    %28 = arith.mulf %18, %27 : vector<32x512xf32>
    %29 = arith.addf %25, %28 : vector<32x512xf32>
    %c32_i32_12 = arith.constant 32 : i32
    %30 = tpu.dynamic_rotate %11 by %c32_i32_12 dim 1 : vector<32x512xf32>, i32 -> vector<32x512xf32>
    %c480_i32_13 = arith.constant 480 : i32
    %31 = tpu.dynamic_rotate %11 by %c480_i32_13 dim 1 : vector<32x512xf32>, i32 -> vector<32x512xf32>
    %c5 = arith.constant 5 : index
    %c0_14 = arith.constant 0 : index
    %32 = vector.load %arg3[%c5, %c0_14] : memref<11x512xf32, #tpu.memory_space<vmem>>, vector<1x512xf32>
    %33 = vector.broadcast %32 : vector<1x512xf32> to vector<32x512xf32>
    %34 = arith.mulf %30, %33 : vector<32x512xf32>
    %c6 = arith.constant 6 : index
    %c0_15 = arith.constant 0 : index
    %35 = vector.load %arg3[%c6, %c0_15] : memref<11x512xf32, #tpu.memory_space<vmem>>, vector<1x512xf32>
    %36 = vector.broadcast %35 : vector<1x512xf32> to vector<32x512xf32>
    %37 = arith.mulf %11, %36 : vector<32x512xf32>
    %38 = arith.addf %34, %37 : vector<32x512xf32>
    %c7 = arith.constant 7 : index
    %c0_16 = arith.constant 0 : index
    %39 = vector.load %arg3[%c7, %c0_16] : memref<11x512xf32, #tpu.memory_space<vmem>>, vector<1x512xf32>
    %40 = vector.broadcast %39 : vector<1x512xf32> to vector<32x512xf32>
    %41 = arith.mulf %31, %40 : vector<32x512xf32>
    %42 = arith.addf %38, %41 : vector<32x512xf32>
    %43 = arith.addf %29, %42 : vector<32x512xf32>
    %c31_i32 = arith.constant 31 : i32
    %44 = tpu.dynamic_rotate %11 by %c31_i32 dim 0 : vector<32x512xf32>, i32 -> vector<32x512xf32>
    %c0_17 = arith.constant 0 : index
    %c0_18 = arith.constant 0 : index
    %45 = vector.load %arg6[%c0_17, %c0_18] : memref<32x1xf32, #tpu.memory_space<vmem>>, vector<32x1xf32>
    %46 = vector.broadcast %45 : vector<32x1xf32> to vector<32x512xf32>
    %47 = arith.mulf %44, %46 : vector<32x512xf32>
    %c32_i32_19 = arith.constant 32 : i32
    %48 = tpu.dynamic_rotate %47 by %c32_i32_19 dim 1 : vector<32x512xf32>, i32 -> vector<32x512xf32>
    %c480_i32_20 = arith.constant 480 : i32
    %49 = tpu.dynamic_rotate %47 by %c480_i32_20 dim 1 : vector<32x512xf32>, i32 -> vector<32x512xf32>
    %c8 = arith.constant 8 : index
    %c0_21 = arith.constant 0 : index
    %50 = vector.load %arg3[%c8, %c0_21] : memref<11x512xf32, #tpu.memory_space<vmem>>, vector<1x512xf32>
    %51 = vector.broadcast %50 : vector<1x512xf32> to vector<32x512xf32>
    %52 = arith.mulf %48, %51 : vector<32x512xf32>
    %c9 = arith.constant 9 : index
    %c0_22 = arith.constant 0 : index
    %53 = vector.load %arg3[%c9, %c0_22] : memref<11x512xf32, #tpu.memory_space<vmem>>, vector<1x512xf32>
    %54 = vector.broadcast %53 : vector<1x512xf32> to vector<32x512xf32>
    %55 = arith.mulf %47, %54 : vector<32x512xf32>
    %56 = arith.addf %52, %55 : vector<32x512xf32>
    %c10 = arith.constant 10 : index
    %c0_23 = arith.constant 0 : index
    %57 = vector.load %arg3[%c10, %c0_23] : memref<11x512xf32, #tpu.memory_space<vmem>>, vector<1x512xf32>
    %58 = vector.broadcast %57 : vector<1x512xf32> to vector<32x512xf32>
    %59 = arith.mulf %49, %58 : vector<32x512xf32>
    %60 = arith.addf %56, %59 : vector<32x512xf32>
    %61 = arith.addf %43, %60 : vector<32x512xf32>
    %c1 = arith.constant 1 : index
    %c0_24 = arith.constant 0 : index
    %62 = vector.load %arg3[%c1, %c0_24] : memref<11x512xf32, #tpu.memory_space<vmem>>, vector<1x512xf32>
    %63 = vector.broadcast %62 : vector<1x512xf32> to vector<32x512xf32>
    %64 = arith.addf %61, %63 : vector<32x512xf32>
    %cst_25 = arith.constant 0.000000e+00 : f32
    %cst_26 = arith.constant 6.000000e+00 : f32
    %65 = vector.broadcast %cst_25 : f32 to vector<32x512xf32>
    %66 = arith.maximumf %65, %64 : vector<32x512xf32>
    %67 = vector.broadcast %cst_26 : f32 to vector<32x512xf32>
    %68 = arith.minimumf %67, %66 : vector<32x512xf32>
    %69 = arith.truncf %68 : vector<32x512xf32> to vector<32x512xbf16>
    %c0_27 = arith.constant 0 : index
    %c0_28 = arith.constant 0 : index
    %70 = vector.load %arg2[%c0_27, %c0_28] : memref<512x128xbf16, #tpu.memory_space<vmem>>, vector<512x128xbf16>
    %cst_29 = arith.constant dense<0.000000e+00> : vector<32x128xf32>
    %71 = tpu.matmul %69, %70, %cst_29 {dimension_numbers = #tpu.dot_dimension_numbers<[1], [0], [0], [1], [0, 0, 1, 1], [], []>} : vector<32x512xbf16>, vector<512x128xbf16>, vector<32x128xf32> -> vector<32x128xf32>
    %72 = arith.addf %71, %12 : vector<32x128xf32>
    %c0_30 = arith.constant 0 : index
    %c0_31 = arith.constant 0 : index
    %73 = vector.load %arg4[%c0_30, %c0_31] : memref<1x128xf32, #tpu.memory_space<vmem>>, vector<1x128xf32>
    %74 = vector.broadcast %73 : vector<1x128xf32> to vector<32x128xf32>
    %75 = arith.addf %72, %74 : vector<32x128xf32>
    %c0_32 = arith.constant 0 : index
    %c0_33 = arith.constant 0 : index
    %76 = vector.load %arg7[%c0_32, %c0_33] : memref<32x128xf32, #tpu.memory_space<vmem>>, vector<32x128xf32>
    tpu.vector_store %arg7[%c0_32, %c0_33], %75 {strides = array<i32>} : memref<32x128xf32, #tpu.memory_space<vmem>>, vector<32x128xf32>,
    return
  }
}

</mosaic_0001>

<llo_original>
// kernel: tpu_custom_call.1
$region0: #{tpu_custom_call.1}
  #allocation0 [shape = 'u32[]', space=smem, size = 0x4, offset = 0x4, fixed_abs, tag = 'smem constant byte address 0x4 - core index']
  #allocation1 [shape = 'u32[144,128]{1,0:T(1,128)}', space=vmem, size = 0x12000, scoped, tag = 'internal scratch']
  %s0 = inlined_call_operand.hbm [shape: f32[32,64], index: 0, kind: input, shape index: {}]
  %s1 = inlined_call_operand.hbm [shape: bf16[64,640], index: 1, kind: input, shape index: {}]
  %s2 = inlined_call_operand.hbm [shape: bf16[512,128], index: 2, kind: input, shape index: {}]
  %s3 = inlined_call_operand.vmem [shape: f32[11,512], index: 3, kind: input, shape index: {}]
  %s4 = inlined_call_operand.vmem [shape: f32[1,128], index: 4, kind: input, shape index: {}]
  %s5 = inlined_call_operand.vmem [shape: f32[32,1], index: 5, kind: input, shape index: {}]
  %s6 = inlined_call_operand.vmem [shape: f32[32,1], index: 6, kind: input, shape index: {}]
  %s7 = inlined_call_operand.hbm [shape: f32[32,128], index: 7, kind: output, shape index: {}]
  %s8 = sld [smem:[#allocation0]]
  $region50: #{tpu_custom_call.1} parent=0
    _
  %s10 = ssub.s32 1, %s8
  %s11 = scalar_select 0, %s10, %s8
  $region1: #{tpu_custom_call.1} parent=0
    #allocation2 [shape = 'u8[16384]{0}', space=vmem, size = 0x4000, scoped, tag = 'input window, operand 0, single buffered']
    #allocation3 [shape = 's32[1]{0}', space=sflag, size = 0x4, scoped, tag = 'scoped memory for tpu_custom_call.1']
    #allocation4 [shape = 's32[1]{0}', space=sflag, size = 0x4, scoped, tag = 'scoped memory for tpu_custom_call.1']
    #allocation5 [shape = 'u8[81920]{0}', space=vmem, size = 0x14000, scoped, tag = 'input window, operand 1, single buffered']
    #allocation6 [shape = 's32[1]{0}', space=sflag, size = 0x4, scoped, tag = 'scoped memory for tpu_custom_call.1']
    #allocation7 [shape = 'u8[131072]{0}', space=vmem, size = 0x20000, scoped, tag = 'input window, operand 2, single buffered']
    #allocation8 [shape = 'u8[16384]{0}', space=vmem, size = 0x4000, scoped, tag = 'output window, operand 0, single buffered']
    %12 = vsyncpa [#allocation3], 0
    %13 = vsyncpa [#allocation6], 0
    %14 = vsyncpa [#allocation4], 0
    // Predicated region
    $region2: #{tpu_custom_call.1} parent=1 // pred_check
      _
    $region3: #{tpu_custom_call.1} parent=1 // pred_check_branch
      %16 = sbr.rel (0) target = $region5
    $region4: #{tpu_custom_call.1} parent=1 // pred_region
      %s18 = ssub.s32 512, 512
      %19 = vsyncadd [#allocation3], %s18
      %s20 = sshll.u32 [#allocation2], 4
      %s21 = int_to_ptr.vmem [resolvable:$true] %s20
      %26 = dma.hbm_to_vmem [thread:$0]  %s0, 512, %s21, [#allocation3], 128, 128, 8
    $region5: #{tpu_custom_call.1} parent=1 // pred_fallthru
      _
    // Predicated region
    $region6: #{tpu_custom_call.1} parent=1 // pred_check
      _
    $region7: #{tpu_custom_call.1} parent=1 // pred_check_branch
      %28 = sbr.rel (0) target = $region9
    $region8: #{tpu_custom_call.1} parent=1 // pred_region
      %s30 = ssub.s32 2560, 2560
      %31 = vsyncadd [#allocation6], %s30
      %s32 = sshll.u32 [#allocation5], 4
      %s33 = int_to_ptr.vmem [resolvable:$true] %s32
      %38 = dma.hbm_to_vmem [thread:$0]  %s1, 2560, %s33, [#allocation6], 320, 320, 20
    $region9: #{tpu_custom_call.1} parent=1 // pred_fallthru
      _
    // Predicated region
    $region10: #{tpu_custom_call.1} parent=1 // pred_check
      _
    $region11: #{tpu_custom_call.1} parent=1 // pred_check_branch
      %40 = sbr.rel (0) target = $region13
    $region12: #{tpu_custom_call.1} parent=1 // pred_region
      %s42 = ssub.s32 4096, 4096
      %43 = vsyncadd [#allocation6], %s42
      %s44 = sshll.u32 [#allocation7], 4
      %s45 = int_to_ptr.vmem [resolvable:$true] %s44
      %50 = dma.hbm_to_vmem [thread:$0]  %s2, 4096, %s45, [#allocation6], 64, 64, 4
    $region13: #{tpu_custom_call.1} parent=1 // pred_fallthru
      _
    // Predicated region
    $region14: #{tpu_custom_call.1} parent=1 // pred_check
      _
    $region15: #{tpu_custom_call.1} parent=1 // pred_check_branch
      %52 = sbr.rel (0) target = $region17
    $region16: #{tpu_custom_call.1} parent=1 // pred_region
      _
    $region17: #{tpu_custom_call.1} parent=1 // pred_fallthru
      _
    // Predicated region
    $region18: #{tpu_custom_call.1} parent=1 // pred_check
      _
    $region19: #{tpu_custom_call.1} parent=1 // pred_check_branch
      %54 = sbr.rel (0) target = $region21
    $region20: #{tpu_custom_call.1} parent=1 // pred_region
      _
    $region21: #{tpu_custom_call.1} parent=1 // pred_fallthru
      _
    // Predicated region
    $region22: #{tpu_custom_call.1} parent=1 // pred_check
      _
    $region23: #{tpu_custom_call.1} parent=1 // pred_check_branch
      %56 = sbr.rel (0) target = $region25
    $region24: #{tpu_custom_call.1} parent=1 // pred_region
      _
    $region25: #{tpu_custom_call.1} parent=1 // pred_fallthru
      _
    // Predicated region
    $region26: #{tpu_custom_call.1} parent=1 // pred_check
      _
    $region27: #{tpu_custom_call.1} parent=1 // pred_check_branch
      %58 = sbr.rel (0) target = $region29
    $region28: #{tpu_custom_call.1} parent=1 // pred_region
      _
    $region29: #{tpu_custom_call.1} parent=1 // pred_fallthru
      _
    // Predicated region
    $region30: #{tpu_custom_call.1} parent=1 // pred_check
      _
    $region31: #{tpu_custom_call.1} parent=1 // pred_check_branch
      %60 = sbr.rel (0) target = $region33
    $region32: #{tpu_custom_call.1} parent=1 // pred_region
      %61 = dma.done [#allocation3], 512
    $region33: #{tpu_custom_call.1} parent=1 // pred_fallthru
      _
    // Predicated region
    $region34: #{tpu_custom_call.1} parent=1 // pred_check
      _
    $region35: #{tpu_custom_call.1} parent=1 // pred_check_branch
      %63 = sbr.rel (0) target = $region37
    $region36: #{tpu_custom_call.1} parent=1 // pred_region
      %64 = dma.done [#allocation6], 2560
    $region37: #{tpu_custom_call.1} parent=1 // pred_fallthru
      _
    // Predicated region
    $region38: #{tpu_custom_call.1} parent=1 // pred_check
      _
    $region39: #{tpu_custom_call.1} parent=1 // pred_check_branch
      %66 = sbr.rel (0) target = $region41
    $region40: #{tpu_custom_call.1} parent=1 // pred_region
      %67 = dma.done [#allocation6], 4096
    $region41: #{tpu_custom_call.1} parent=1 // pred_fallthru
      _
    %v69 = vld [vmem:[#allocation2] sm:$0xff]
    %v70 = vld [vmem:[#allocation2 + $0x8] sm:$0xff]
    %v71 = vld [vmem:[#allocation2 + $0x10] sm:$0xff]
    %v72 = vld [vmem:[#allocation2 + $0x18] sm:$0xff]
    %v73 = vpack.c.bf16 %v70, %v69
    %v74 = vpack.c.bf16 %v72, %v71
    %v75 = vld [vmem:[#allocation5] sm:$0xff]
    %v76 = vld [vmem:[#allocation5 + $0x8] sm:$0xff]
    %v77 = vld [vmem:[#allocation5 + $0x10] sm:$0xf]
    %v78 = vld [vmem:[#allocation5 + $0x14] sm:$0xff]
    %v79 = vld [vmem:[#allocation5 + $0x1c] sm:$0xff]
    %v80 = vld [vmem:[#allocation5 + $0x24] sm:$0xf]
    %v81 = vld [vmem:[#allocation5 + $0x28] sm:$0xff]
    %v82 = vld [vmem:[#allocation5 + $0x30] sm:$0xff]
    %v83 = vld [vmem:[#allocation5 + $0x38] sm:$0xf]
    %v84 = vld [vmem:[#allocation5 + $0x3c] sm:$0xff]
    %v85 = vld [vmem:[#allocation5 + $0x44] sm:$0xff]
    %v86 = vld [vmem:[#allocation5 + $0x4c] sm:$0xf]
    %v87 = vld [vmem:[#allocation5 + $0x50] sm:$0xff]
    %v88 = vld [vmem:[#allocation5 + $0x58] sm:$0xff]
    %v89 = vld [vmem:[#allocation5 + $0x60] sm:$0xf]
    %v90 = vld [vmem:[#allocation5 + $0x64] sm:$0xff]
    %v91 = vld [vmem:[#allocation5 + $0x6c] sm:$0xff]
    %v92 = vld [vmem:[#allocation5 + $0x74] sm:$0xf]
    %v93 = vld [vmem:[#allocation5 + $0x78] sm:$0xff]
    %v94 = vld [vmem:[#allocation5 + $0x80] sm:$0xff]
    %v95 = vld [vmem:[#allocation5 + $0x88] sm:$0xf]
    %v96 = vld [vmem:[#allocation5 + $0x8c] sm:$0xff]
    %v97 = vld [vmem:[#allocation5 + $0x94] sm:$0xff]
    %v98 = vld [vmem:[#allocation5 + $0x9c] sm:$0xf]
    %v123 = vunpack.c.l.b16 %v75
    %v124 = vunpack.c.h.b16 %v75
    %v125 = vunpack.c.l.b16 %v76
    %v126 = vunpack.c.h.b16 %v76
    %v127 = vunpack.c.l.b16 %v77
    %v128 = vunpack.c.l.b16 %v78
    %v129 = vunpack.c.h.b16 %v78
    %v130 = vunpack.c.l.b16 %v79
    %v131 = vunpack.c.h.b16 %v79
    %v132 = vunpack.c.l.b16 %v80
    %v133 = vunpack.c.l.b16 %v81
    %v134 = vunpack.c.h.b16 %v81
    %v135 = vunpack.c.l.b16 %v82
    %v136 = vunpack.c.h.b16 %v82
    %v137 = vunpack.c.l.b16 %v83
    %v138 = vunpack.c.l.b16 %v84
    %v139 = vunpack.c.h.b16 %v84
    %v140 = vunpack.c.l.b16 %v85
    %v141 = vunpack.c.h.b16 %v85
    %v142 = vunpack.c.l.b16 %v86
    %v143 = vunpack.c.l.b16 %v87
    %v144 = vunpack.c.h.b16 %v87
    %v145 = vunpack.c.l.b16 %v88
    %v146 = vunpack.c.h.b16 %v88
    %v147 = vunpack.c.l.b16 %v89
    %v148 = vunpack.c.l.b16 %v90
    %v149 = vunpack.c.h.b16 %v90
    %v150 = vunpack.c.l.b16 %v91
    %v151 = vunpack.c.h.b16 %v91
    %v152 = vunpack.c.l.b16 %v92
    %v153 = vunpack.c.l.b16 %v93
    %v154 = vunpack.c.h.b16 %v93
    %v155 = vunpack.c.l.b16 %v94
    %v156 = vunpack.c.h.b16 %v94
    %v157 = vunpack.c.l.b16 %v95
    %v158 = vunpack.c.l.b16 %v96
    %v159 = vunpack.c.h.b16 %v96
    %v160 = vunpack.c.l.b16 %v97
    %v161 = vunpack.c.h.b16 %v97
    %v162 = vunpack.c.l.b16 %v98
    %v163 = vpack.c.b16 %v128, %v123
    %v164 = vpack.c.b16 %v129, %v124
    %v165 = vpack.c.b16 %v130, %v125
    %v166 = vpack.c.b16 %v131, %v126
    %v167 = vpack.c.b16 %v132, %v127
    %v168 = vpack.c.b16 %v138, %v133
    %v169 = vpack.c.b16 %v139, %v134
    %v170 = vpack.c.b16 %v140, %v135
    %v171 = vpack.c.b16 %v141, %v136
    %v172 = vpack.c.b16 %v142, %v137
    %v173 = vpack.c.b16 %v148, %v143
    %v174 = vpack.c.b16 %v149, %v144
    %v175 = vpack.c.b16 %v150, %v145
    %v176 = vpack.c.b16 %v151, %v146
    %v177 = vpack.c.b16 %v152, %v147
    %v178 = vpack.c.b16 %v158, %v153
    %v179 = vpack.c.b16 %v159, %v154
    %v180 = vpack.c.b16 %v160, %v155
    %v181 = vpack.c.b16 %v161, %v156
    %v182 = vpack.c.b16 %v162, %v157
    %vm203 = vcmask 523264
    %v205 = vsel %vm203, %v73, 0
    %v208 = vsel %vm203, %v74, 0
    %210 = vmatprep.subr.bf16.mxu0 %v164
    %211 = vmatpush1.bf16.msra.mxu0 %v163
    %212 = vmatprep.subr.bf16.mxu0 %v169
    %213 = vmatpush1.bf16.msra.mxu0 %v168
    %214 = vmatprep.subr.bf16.mxu0 %v174
    %215 = vmatpush1.bf16.msra.mxu0 %v173
    %216 = vmatprep.subr.bf16.mxu0 %v179
    %217 = vmatpush1.bf16.msra.mxu0 %v178
    %218 = vmatprep.subr.bf16.mxu0 0
    %219 = vmatpush1.bf16.msra.mxu0 0
    %220 = vmatprep.subr.bf16.mxu0 0
    %221 = vmatpush1.bf16.msra.mxu0 0
    %222 = vmatprep.subr.bf16.mxu0 0
    %223 = vmatpush1.bf16.msra.mxu0 0
    %224 = vmatprep.subr.bf16.mxu0 0
    %225 = vmatpush1.bf16.msra.mxu0 0
    %226 = vmatprep.subr.bf16.mxu0 0
    %227 = vmatpush1.bf16.msra.mxu0 0
    %228 = vmatprep.subr.bf16.mxu0 0
    %229 = vmatpush1.bf16.msra.mxu0 0
    %230 = vmatprep.subr.bf16.mxu0 0
    %231 = vmatpush1.bf16.msra.mxu0 0
    %232 = vmatprep.subr.bf16.mxu0 0
    %233 = vmatpush1.bf16.msra.mxu0 0
    %234 = vmatprep.subr.bf16.mxu0 0
    %235 = vmatpush1.bf16.msra.mxu0 0
    %236 = vmatprep.subr.bf16.mxu0 0
    %237 = vmatpush1.bf16.msra.mxu0 0
    %238 = vmatprep.subr.bf16.mxu0 0
    %239 = vmatpush1.bf16.msra.mxu0 0
    %240 = vmatprep.subr.bf16.mxu0 0
    %241 = vmatpush1.bf16.msra.mxu0 0
    %242 = vmatprep.mubr.bf16.mxu0 0
    %243 = vmatmul.mubr.bf16.gmra.mrb[0].mxu0 %v205
    %v244 = vpop.f32.mrb[0].mxu0
    %v245 = vadd.f32 0.0, %v244
    %v246 = vpop.f32.mrb[0].mxu0
    %v247 = vadd.f32 0.0, %v246
    %v248 = vpop.f32.mrb[0].mxu0
    %v249 = vadd.f32 0.0, %v248
    %v250 = vpop.f32.mrb[0].mxu0
    %v251 = vadd.f32 0.0, %v250
    %252 = vmatprep.mubr.bf16.mxu0 0
    %253 = vmatmul.mubr.bf16.gmra.mrb[0].mxu0 %v208
    %v254 = vpop.f32.mrb[0].mxu0
    %v255 = vadd.f32 0.0, %v254
    %v256 = vpop.f32.mrb[0].mxu0
    %v257 = vadd.f32 0.0, %v256
    %v258 = vpop.f32.mrb[0].mxu0
    %v259 = vadd.f32 0.0, %v258
    %v260 = vpop.f32.mrb[0].mxu0
    %v261 = vadd.f32 0.0, %v260
    %262 = vdwg.mxu0
    %263 = vmatprep.subr.bf16.mxu0 %v166
    %264 = vmatpush1.bf16.msra.mxu0 %v165
    %265 = vmatprep.subr.bf16.mxu0 %v171
    %266 = vmatpush1.bf16.msra.mxu0 %v170
    %267 = vmatprep.subr.bf16.mxu0 %v176
    %268 = vmatpush1.bf16.msra.mxu0 %v175
    %269 = vmatprep.subr.bf16.mxu0 %v181
    %270 = vmatpush1.bf16.msra.mxu0 %v180
    %271 = vmatprep.subr.bf16.mxu0 0
    %272 = vmatpush1.bf16.msra.mxu0 0
    %273 = vmatprep.subr.bf16.mxu0 0
    %274 = vmatpush1.bf16.msra.mxu0 0
    %275 = vmatprep.subr.bf16.mxu0 0
    %276 = vmatpush1.bf16.msra.mxu0 0
    %277 = vmatprep.subr.bf16.mxu0 0
    %278 = vmatpush1.bf16.msra.mxu0 0
    %279 = vmatprep.subr.bf16.mxu0 0
    %280 = vmatpush1.bf16.msra.mxu0 0
    %281 = vmatprep.subr.bf16.mxu0 0
    %282 = vmatpush1.bf16.msra.mxu0 0
    %283 = vmatprep.subr.bf16.mxu0 0
    %284 = vmatpush1.bf16.msra.mxu0 0
    %285 = vmatprep.subr.bf16.mxu0 0
    %286 = vmatpush1.bf16.msra.mxu0 0
    %287 = vmatprep.subr.bf16.mxu0 0
    %288 = vmatpush1.bf16.msra.mxu0 0
    %289 = vmatprep.subr.bf16.mxu0 0
    %290 = vmatpush1.bf16.msra.mxu0 0
    %291 = vmatprep.subr.bf16.mxu0 0
    %292 = vmatpush1.bf16.msra.mxu0 0
    %293 = vmatprep.subr.bf16.mxu0 0
    %294 = vmatpush1.bf16.msra.mxu0 0
    %295 = vmatprep.mubr.bf16.mxu0 0
    %296 = vmatmul.mubr.bf16.gmra.mrb[0].mxu0 %v205
    %v297 = vpop.f32.mrb[0].mxu0
    %v298 = vadd.f32 0.0, %v297
    %v299 = vpop.f32.mrb[0].mxu0
    %v300 = vadd.f32 0.0, %v299
    %v301 = vpop.f32.mrb[0].mxu0
    %v302 = vadd.f32 0.0, %v301
    %v303 = vpop.f32.mrb[0].mxu0
    %v304 = vadd.f32 0.0, %v303
    %305 = vmatprep.mubr.bf16.mxu0 0
    %306 = vmatmul.mubr.bf16.gmra.mrb[0].mxu0 %v208
    %v307 = vpop.f32.mrb[0].mxu0
    %v308 = vadd.f32 0.0, %v307
    %v309 = vpop.f32.mrb[0].mxu0
    %v310 = vadd.f32 0.0, %v309
    %v311 = vpop.f32.mrb[0].mxu0
    %v312 = vadd.f32 0.0, %v311
    %v313 = vpop.f32.mrb[0].mxu0
    %v314 = vadd.f32 0.0, %v313
    %315 = vdwg.mxu0
    %316 = vmatprep.subr.bf16.mxu0 0
    %317 = vmatpush1.bf16.msra.mxu0 %v167
    %318 = vmatprep.subr.bf16.mxu0 0
    %319 = vmatpush1.bf16.msra.mxu0 %v172
    %320 = vmatprep.subr.bf16.mxu0 0
    %321 = vmatpush1.bf16.msra.mxu0 %v177
    %322 = vmatprep.subr.bf16.mxu0 0
    %323 = vmatpush1.bf16.msra.mxu0 %v182
    %324 = vmatprep.subr.bf16.mxu0 0
    %325 = vmatpush1.bf16.msra.mxu0 0
    %326 = vmatprep.subr.bf16.mxu0 0
    %327 = vmatpush1.bf16.msra.mxu0 0
    %328 = vmatprep.subr.bf16.mxu0 0
    %329 = vmatpush1.bf16.msra.mxu0 0
    %330 = vmatprep.subr.bf16.mxu0 0
    %331 = vmatpush1.bf16.msra.mxu0 0
    %332 = vmatprep.subr.bf16.mxu0 0
    %333 = vmatpush1.bf16.msra.mxu0 0
    %334 = vmatprep.subr.bf16.mxu0 0
    %335 = vmatpush1.bf16.msra.mxu0 0
    %336 = vmatprep.subr.bf16.mxu0 0
    %337 = vmatpush1.bf16.msra.mxu0 0
    %338 = vmatprep.subr.bf16.mxu0 0
    %339 = vmatpush1.bf16.msra.mxu0 0
    %340 = vmatprep.subr.bf16.mxu0 0
    %341 = vmatpush1.bf16.msra.mxu0 0
    %342 = vmatprep.subr.bf16.mxu0 0
    %343 = vmatpush1.bf16.msra.mxu0 0
    %344 = vmatprep.subr.bf16.mxu0 0
    %345 = vmatpush1.bf16.msra.mxu0 0
    %346 = vmatprep.subr.bf16.mxu0 0
    %347 = vmatpush1.bf16.msra.mxu0 0
    %348 = vmatprep.mubr.bf16.mxu0 0
    %349 = vmatmul.mubr.bf16.gmra.mrb[0].mxu0 %v205
    %v350 = vpop.f32.mrb[0].mxu0
    %v351 = vadd.f32 0.0, %v350
    %v352 = vpop.f32.mrb[0].mxu0
    %v353 = vpop.f32.mrb[0].mxu0
    %v354 = vadd.f32 0.0, %v353
    %v355 = vpop.f32.mrb[0].mxu0
    %356 = vmatprep.mubr.bf16.mxu0 0
    %357 = vmatmul.mubr.bf16.gmra.mrb[0].mxu0 %v208
    %v358 = vpop.f32.mrb[0].mxu0
    %v359 = vadd.f32 0.0, %v358
    %v360 = vpop.f32.mrb[0].mxu0
    %v361 = vpop.f32.mrb[0].mxu0
    %v362 = vadd.f32 0.0, %v361
    %v363 = vpop.f32.mrb[0].mxu0
    %364 = vdwg.mxu0
    %v365 = vld [vmem:[%s3] ss:$8 sm:$0xf]
    %v367 = vlaneseq
    %v368 = vshrl.u32 %v367, 7
    %v369 = vsub.s32 0, %v368
    %v370 = vrot.slane %v365, %v369
    %v371 = vlaneseq
    %v372 = vshrl.u32 %v371, 7
    %v373 = vsub.s32 1, %v372
    %v374 = vrot.slane %v365, %v373
    %v375 = vlaneseq
    %v376 = vshrl.u32 %v375, 7
    %v377 = vsub.s32 2, %v376
    %v378 = vrot.slane %v365, %v377
    %v379 = vlaneseq
    %v380 = vshrl.u32 %v379, 7
    %v381 = vsub.s32 3, %v380
    %v382 = vrot.slane %v365, %v381
    %v387 = vadd.f32 %v245, %v370
    %v388 = vadd.f32 %v247, %v374
    %v389 = vadd.f32 %v298, %v378
    %v390 = vadd.f32 %v300, %v382
    %v391 = vadd.f32 %v249, %v370
    %v392 = vadd.f32 %v251, %v374
    %v393 = vadd.f32 %v302, %v378
    %v394 = vadd.f32 %v304, %v382
    %v395 = vadd.f32 %v255, %v370
    %v396 = vadd.f32 %v257, %v374
    %v397 = vadd.f32 %v308, %v378
    %v398 = vadd.f32 %v310, %v382
    %v399 = vadd.f32 %v259, %v370
    %v400 = vadd.f32 %v261, %v374
    %v401 = vadd.f32 %v312, %v378
    %v402 = vadd.f32 %v314, %v382
    %v403 = vmax.f32 %v387, 0.0
    %v404 = vmax.f32 %v388, 0.0
    %v405 = vmax.f32 %v389, 0.0
    %v406 = vmax.f32 %v390, 0.0
    %v407 = vmax.f32 %v391, 0.0
    %v408 = vmax.f32 %v392, 0.0
    %v409 = vmax.f32 %v393, 0.0
    %v410 = vmax.f32 %v394, 0.0
    %v411 = vmax.f32 %v395, 0.0
    %v412 = vmax.f32 %v396, 0.0
    %v413 = vmax.f32 %v397, 0.0
    %v414 = vmax.f32 %v398, 0.0
    %v415 = vmax.f32 %v399, 0.0
    %v416 = vmax.f32 %v400, 0.0
    %v417 = vmax.f32 %v401, 0.0
    %v418 = vmax.f32 %v402, 0.0
    %v419 = vmin.f32 %v403, 6.0
    %v420 = vmin.f32 %v404, 6.0
    %v421 = vmin.f32 %v405, 6.0
    %v422 = vmin.f32 %v406, 6.0
    %v423 = vmin.f32 %v407, 6.0
    %v424 = vmin.f32 %v408, 6.0
    %v425 = vmin.f32 %v409, 6.0
    %v426 = vmin.f32 %v410, 6.0
    %v427 = vmin.f32 %v411, 6.0
    %v428 = vmin.f32 %v412, 6.0
    %v429 = vmin.f32 %v413, 6.0
    %v430 = vmin.f32 %v414, 6.0
    %v431 = vmin.f32 %v415, 6.0
    %v432 = vmin.f32 %v416, 6.0
    %v433 = vmin.f32 %v417, 6.0
    %v434 = vmin.f32 %v418, 6.0
    %v435 = vrot.slane %v419, 7
    %v436 = vrot.slane %v420, 7
    %v437 = vrot.slane %v421, 7
    %v438 = vrot.slane %v422, 7
    %v439 = vrot.slane %v423, 7
    %v440 = vrot.slane %v424, 7
    %v441 = vrot.slane %v425, 7
    %v442 = vrot.slane %v426, 7
    %v443 = vrot.slane %v427, 7
    %v444 = vrot.slane %v428, 7
    %v445 = vrot.slane %v429, 7
    %v446 = vrot.slane %v430, 7
    %v447 = vrot.slane %v431, 7
    %v448 = vrot.slane %v432, 7
    %v449 = vrot.slane %v433, 7
    %v450 = vrot.slane %v434, 7
    %v451 = vlaneseq
    %v452 = vshrl.u32 %v451, 7
    %vm453 = vcmp.lt.s32.totalorder %v452, 1
    %v454 = vsel %vm453, %v443, %v447
    %v455 = vsel %vm453, %v444, %v448
    %v456 = vsel %vm453, %v445, %v449
    %v457 = vsel %vm453, %v446, %v450
    %v458 = vsel %vm453, %v439, %v443
    %v459 = vsel %vm453, %v440, %v444
    %v460 = vsel %vm453, %v441, %v445
    %v461 = vsel %vm453, %v442, %v446
    %v462 = vsel %vm453, %v435, %v439
    %v463 = vsel %vm453, %v436, %v440
    %v464 = vsel %vm453, %v437, %v441
    %v465 = vsel %vm453, %v438, %v442
    %v466 = vsel %vm453, %v447, %v435
    %v467 = vsel %vm453, %v448, %v436
    %v468 = vsel %vm453, %v449, %v437
    %v469 = vsel %vm453, %v450, %v438
    %v470 = vld [vmem:[%s5] sm:$0xff]
    %v471 = vld [vmem:[%s5 + $0x8] sm:$0xff]
    %v472 = vld [vmem:[%s5 + $0x10] sm:$0xff]
    %v473 = vld [vmem:[%s5 + $0x18] sm:$0xff]
    %475 = vset.pattern.permute.xlu0 0
    %476 = vperm.xlu0 %475, %v470
    %v477 = vpop.permute.xlu0 %476
    %480 = vset.pattern.permute.xlu0 0
    %481 = vperm.xlu0 %480, %v471
    %v482 = vpop.permute.xlu0 %481
    %485 = vset.pattern.permute.xlu0 0
    %486 = vperm.xlu0 %485, %v472
    %v487 = vpop.permute.xlu0 %486
    %490 = vset.pattern.permute.xlu0 0
    %491 = vperm.xlu0 %490, %v473
    %v492 = vpop.permute.xlu0 %491
    %v494 = vmul.f32 %v466, %v477
    %v495 = vmul.f32 %v467, %v477
    %v496 = vmul.f32 %v468, %v477
    %v497 = vmul.f32 %v469, %v477
    %v498 = vmul.f32 %v462, %v482
    %v499 = vmul.f32 %v463, %v482
    %v500 = vmul.f32 %v464, %v482
    %v501 = vmul.f32 %v465, %v482
    %v502 = vmul.f32 %v458, %v487
    %v503 = vmul.f32 %v459, %v487
    %v504 = vmul.f32 %v460, %v487
    %v505 = vmul.f32 %v461, %v487
    %v506 = vmul.f32 %v454, %v492
    %v507 = vmul.f32 %v455, %v492
    %v508 = vmul.f32 %v456, %v492
    %v509 = vmul.f32 %v457, %v492
    %510 = vrot.lane.b32.xlu0 %v494, 32
    %v511 = vpop.permute.xlu0 %510
    %512 = vrot.lane.b32.xlu0 %v498, 32
    %v513 = vpop.permute.xlu0 %512
    %514 = vrot.lane.b32.xlu0 %v502, 32
    %v515 = vpop.permute.xlu0 %514
    %516 = vrot.lane.b32.xlu0 %v506, 32
    %v517 = vpop.permute.xlu0 %516
    %518 = vrot.lane.b32.xlu0 %v495, 32
    %v519 = vpop.permute.xlu0 %518
    %520 = vrot.lane.b32.xlu0 %v499, 32
    %v521 = vpop.permute.xlu0 %520
    %522 = vrot.lane.b32.xlu0 %v503, 32
    %v523 = vpop.permute.xlu0 %522
    %524 = vrot.lane.b32.xlu0 %v507, 32
    %v525 = vpop.permute.xlu0 %524
    %526 = vrot.lane.b32.xlu0 %v496, 32
    %v527 = vpop.permute.xlu0 %526
    %528 = vrot.lane.b32.xlu0 %v500, 32
    %v529 = vpop.permute.xlu0 %528
    %530 = vrot.lane.b32.xlu0 %v504, 32
    %v531 = vpop.permute.xlu0 %530
    %532 = vrot.lane.b32.xlu0 %v508, 32
    %v533 = vpop.permute.xlu0 %532
    %534 = vrot.lane.b32.xlu0 %v497, 32
    %v535 = vpop.permute.xlu0 %534
    %536 = vrot.lane.b32.xlu0 %v501, 32
    %v537 = vpop.permute.xlu0 %536
    %538 = vrot.lane.b32.xlu0 %v505, 32
    %v539 = vpop.permute.xlu0 %538
    %540 = vrot.lane.b32.xlu0 %v509, 32
    %v541 = vpop.permute.xlu0 %540
    %v542 = vlaneseq
    %v543 = vand.u32 %v542, 127
    %vm544 = vcmp.lt.s32.totalorder %v543, 32
    %v545 = vsel %vm544, %v527, %v535
    %v546 = vsel %vm544, %v529, %v537
    %v547 = vsel %vm544, %v531, %v539
    %v548 = vsel %vm544, %v533, %v541
    %v549 = vsel %vm544, %v519, %v527
    %v550 = vsel %vm544, %v521, %v529
    %v551 = vsel %vm544, %v523, %v531
    %v552 = vsel %vm544, %v525, %v533
    %v553 = vsel %vm544, %v511, %v519
    %v554 = vsel %vm544, %v513, %v521
    %v555 = vsel %vm544, %v515, %v523
    %v556 = vsel %vm544, %v517, %v525
    %v557 = vsel %vm544, %v535, %v511
    %v558 = vsel %vm544, %v537, %v513
    %v559 = vsel %vm544, %v539, %v515
    %v560 = vsel %vm544, %v541, %v517
    %561 = vrot.lane.b32.xlu0 %v494, 96
    %v562 = vpop.permute.xlu0 %561
    %563 = vrot.lane.b32.xlu0 %v498, 96
    %v564 = vpop.permute.xlu0 %563
    %565 = vrot.lane.b32.xlu0 %v502, 96
    %v566 = vpop.permute.xlu0 %565
    %567 = vrot.lane.b32.xlu0 %v506, 96
    %v568 = vpop.permute.xlu0 %567
    %569 = vrot.lane.b32.xlu0 %v495, 96
    %v570 = vpop.permute.xlu0 %569
    %571 = vrot.lane.b32.xlu0 %v499, 96
    %v572 = vpop.permute.xlu0 %571
    %573 = vrot.lane.b32.xlu0 %v503, 96
    %v574 = vpop.permute.xlu0 %573
    %575 = vrot.lane.b32.xlu0 %v507, 96
    %v576 = vpop.permute.xlu0 %575
    %577 = vrot.lane.b32.xlu0 %v496, 96
    %v578 = vpop.permute.xlu0 %577
    %579 = vrot.lane.b32.xlu0 %v500, 96
    %v580 = vpop.permute.xlu0 %579
    %581 = vrot.lane.b32.xlu0 %v504, 96
    %v582 = vpop.permute.xlu0 %581
    %583 = vrot.lane.b32.xlu0 %v508, 96
    %v584 = vpop.permute.xlu0 %583
    %585 = vrot.lane.b32.xlu0 %v497, 96
    %v586 = vpop.permute.xlu0 %585
    %587 = vrot.lane.b32.xlu0 %v501, 96
    %v588 = vpop.permute.xlu0 %587
    %589 = vrot.lane.b32.xlu0 %v505, 96
    %v590 = vpop.permute.xlu0 %589
    %591 = vrot.lane.b32.xlu0 %v509, 96
    %v592 = vpop.permute.xlu0 %591
    %vm593 = vcmp.lt.s32.totalorder %v543, 96
    %v594 = vsel %vm593, %v578, %v586
    %v595 = vsel %vm593, %v580, %v588
    %v596 = vsel %vm593, %v582, %v590
    %v597 = vsel %vm593, %v584, %v592
    %v598 = vsel %vm593, %v570, %v578
    %v599 = vsel %vm593, %v572, %v580
    %v600 = vsel %vm593, %v574, %v582
    %v601 = vsel %vm593, %v576, %v584
    %v602 = vsel %vm593, %v562, %v570
    %v603 = vsel %vm593, %v564, %v572
    %v604 = vsel %vm593, %v566, %v574
    %v605 = vsel %vm593, %v568, %v576
    %v606 = vsel %vm593, %v586, %v562
    %v607 = vsel %vm593, %v588, %v564
    %v608 = vsel %vm593, %v590, %v566
    %v609 = vsel %vm593, %v592, %v568
    %s610 = scalar_lea.vmem %s3, 2
    %v611 = vld [vmem:[%s610] ss:$8 sm:$0xf]
    %v613 = vlaneseq
    %v614 = vshrl.u32 %v613, 7
    %v615 = vsub.s32 0, %v614
    %v616 = vrot.slane %v611, %v615
    %v617 = vlaneseq
    %v618 = vshrl.u32 %v617, 7
    %v619 = vsub.s32 1, %v618
    %v620 = vrot.slane %v611, %v619
    %v621 = vlaneseq
    %v622 = vshrl.u32 %v621, 7
    %v623 = vsub.s32 2, %v622
    %v624 = vrot.slane %v611, %v623
    %v625 = vlaneseq
    %v626 = vshrl.u32 %v625, 7
    %v627 = vsub.s32 3, %v626
    %v628 = vrot.slane %v611, %v627
    %v633 = vmul.f32 %v557, %v616
    %v634 = vmul.f32 %v553, %v620
    %v635 = vmul.f32 %v549, %v624
    %v636 = vmul.f32 %v545, %v628
    %v637 = vmul.f32 %v558, %v616
    %v638 = vmul.f32 %v554, %v620
    %v639 = vmul.f32 %v550, %v624
    %v640 = vmul.f32 %v546, %v628
    %v641 = vmul.f32 %v559, %v616
    %v642 = vmul.f32 %v555, %v620
    %v643 = vmul.f32 %v551, %v624
    %v644 = vmul.f32 %v547, %v628
    %v645 = vmul.f32 %v560, %v616
    %v646 = vmul.f32 %v556, %v620
    %v647 = vmul.f32 %v552, %v624
    %v648 = vmul.f32 %v548, %v628
    %s649 = scalar_lea.vmem %s3, 3
    %v650 = vld [vmem:[%s649] ss:$8 sm:$0xf]
    %v652 = vlaneseq
    %v653 = vshrl.u32 %v652, 7
    %v654 = vsub.s32 0, %v653
    %v655 = vrot.slane %v650, %v654
    %v656 = vlaneseq
    %v657 = vshrl.u32 %v656, 7
    %v658 = vsub.s32 1, %v657
    %v659 = vrot.slane %v650, %v658
    %v660 = vlaneseq
    %v661 = vshrl.u32 %v660, 7
    %v662 = vsub.s32 2, %v661
    %v663 = vrot.slane %v650, %v662
    %v664 = vlaneseq
    %v665 = vshrl.u32 %v664, 7
    %v666 = vsub.s32 3, %v665
    %v667 = vrot.slane %v650, %v666
    %v672 = vmul.f32 %v494, %v655
    %v673 = vmul.f32 %v495, %v659
    %v674 = vmul.f32 %v496, %v663
    %v675 = vmul.f32 %v497, %v667
    %v676 = vmul.f32 %v498, %v655
    %v677 = vmul.f32 %v499, %v659
    %v678 = vmul.f32 %v500, %v663
    %v679 = vmul.f32 %v501, %v667
    %v680 = vmul.f32 %v502, %v655
    %v681 = vmul.f32 %v503, %v659
    %v682 = vmul.f32 %v504, %v663
    %v683 = vmul.f32 %v505, %v667
    %v684 = vmul.f32 %v506, %v655
    %v685 = vmul.f32 %v507, %v659
    %v686 = vmul.f32 %v508, %v663
    %v687 = vmul.f32 %v509, %v667
    %v688 = vadd.f32 %v633, %v672
    %v689 = vadd.f32 %v634, %v673
    %v690 = vadd.f32 %v635, %v674
    %v691 = vadd.f32 %v636, %v675
    %v692 = vadd.f32 %v637, %v676
    %v693 = vadd.f32 %v638, %v677
    %v694 = vadd.f32 %v639, %v678
    %v695 = vadd.f32 %v640, %v679
    %v696 = vadd.f32 %v641, %v680
    %v697 = vadd.f32 %v642, %v681
    %v698 = vadd.f32 %v643, %v682
    %v699 = vadd.f32 %v644, %v683
    %v700 = vadd.f32 %v645, %v684
    %v701 = vadd.f32 %v646, %v685
    %v702 = vadd.f32 %v647, %v686
    %v703 = vadd.f32 %v648, %v687
    %s704 = scalar_lea.vmem %s3, 4
    %v705 = vld [vmem:[%s704] ss:$8 sm:$0xf]
    %v707 = vlaneseq
    %v708 = vshrl.u32 %v707, 7
    %v709 = vsub.s32 0, %v708
    %v710 = vrot.slane %v705, %v709
    %v711 = vlaneseq
    %v712 = vshrl.u32 %v711, 7
    %v713 = vsub.s32 1, %v712
    %v714 = vrot.slane %v705, %v713
    %v715 = vlaneseq
    %v716 = vshrl.u32 %v715, 7
    %v717 = vsub.s32 2, %v716
    %v718 = vrot.slane %v705, %v717
    %v719 = vlaneseq
    %v720 = vshrl.u32 %v719, 7
    %v721 = vsub.s32 3, %v720
    %v722 = vrot.slane %v705, %v721
    %v727 = vmul.f32 %v602, %v710
    %v728 = vmul.f32 %v598, %v714
    %v729 = vmul.f32 %v594, %v718
    %v730 = vmul.f32 %v606, %v722
    %v731 = vmul.f32 %v603, %v710
    %v732 = vmul.f32 %v599, %v714
    %v733 = vmul.f32 %v595, %v718
    %v734 = vmul.f32 %v607, %v722
    %v735 = vmul.f32 %v604, %v710
    %v736 = vmul.f32 %v600, %v714
    %v737 = vmul.f32 %v596, %v718
    %v738 = vmul.f32 %v608, %v722
    %v739 = vmul.f32 %v605, %v710
    %v740 = vmul.f32 %v601, %v714
    %v741 = vmul.f32 %v597, %v718
    %v742 = vmul.f32 %v609, %v722
    %v743 = vadd.f32 %v688, %v727
    %v744 = vadd.f32 %v689, %v728
    %v745 = vadd.f32 %v690, %v729
    %v746 = vadd.f32 %v691, %v730
    %v747 = vadd.f32 %v692, %v731
    %v748 = vadd.f32 %v693, %v732
    %v749 = vadd.f32 %v694, %v733
    %v750 = vadd.f32 %v695, %v734
    %v751 = vadd.f32 %v696, %v735
    %v752 = vadd.f32 %v697, %v736
    %v753 = vadd.f32 %v698, %v737
    %v754 = vadd.f32 %v699, %v738
    %v755 = vadd.f32 %v700, %v739
    %v756 = vadd.f32 %v701, %v740
    %v757 = vadd.f32 %v702, %v741
    %v758 = vadd.f32 %v703, %v742
    %759 = vrot.lane.b32.xlu0 %v419, 32
    %v760 = vpop.permute.xlu0 %759
    %761 = vrot.lane.b32.xlu0 %v423, 32
    %v762 = vpop.permute.xlu0 %761
    %763 = vrot.lane.b32.xlu0 %v427, 32
    %v764 = vpop.permute.xlu0 %763
    %765 = vrot.lane.b32.xlu0 %v431, 32
    %v766 = vpop.permute.xlu0 %765
    %767 = vrot.lane.b32.xlu0 %v420, 32
    %v768 = vpop.permute.xlu0 %767
    %769 = vrot.lane.b32.xlu0 %v424, 32
    %v770 = vpop.permute.xlu0 %769
    %771 = vrot.lane.b32.xlu0 %v428, 32
    %v772 = vpop.permute.xlu0 %771
    %773 = vrot.lane.b32.xlu0 %v432, 32
    %v774 = vpop.permute.xlu0 %773
    %775 = vrot.lane.b32.xlu0 %v421, 32
    %v776 = vpop.permute.xlu0 %775
    %777 = vrot.lane.b32.xlu0 %v425, 32
    %v778 = vpop.permute.xlu0 %777
    %779 = vrot.lane.b32.xlu0 %v429, 32
    %v780 = vpop.permute.xlu0 %779
    %781 = vrot.lane.b32.xlu0 %v433, 32
    %v782 = vpop.permute.xlu0 %781
    %783 = vrot.lane.b32.xlu0 %v422, 32
    %v784 = vpop.permute.xlu0 %783
    %785 = vrot.lane.b32.xlu0 %v426, 32
    %v786 = vpop.permute.xlu0 %785
    %787 = vrot.lane.b32.xlu0 %v430, 32
    %v788 = vpop.permute.xlu0 %787
    %789 = vrot.lane.b32.xlu0 %v434, 32
    %v790 = vpop.permute.xlu0 %789
    %v791 = vsel %vm544, %v776, %v784
    %v792 = vsel %vm544, %v778, %v786
    %v793 = vsel %vm544, %v780, %v788
    %v794 = vsel %vm544, %v782, %v790
    %v795 = vsel %vm544, %v768, %v776
    %v796 = vsel %vm544, %v770, %v778
    %v797 = vsel %vm544, %v772, %v780
    %v798 = vsel %vm544, %v774, %v782
    %v799 = vsel %vm544, %v760, %v768
    %v800 = vsel %vm544, %v762, %v770
    %v801 = vsel %vm544, %v764, %v772
    %v802 = vsel %vm544, %v766, %v774
    %v803 = vsel %vm544, %v784, %v760
    %v804 = vsel %vm544, %v786, %v762
    %v805 = vsel %vm544, %v788, %v764
    %v806 = vsel %vm544, %v790, %v766
    %807 = vrot.lane.b32.xlu0 %v419, 96
    %v808 = vpop.permute.xlu0 %807
    %809 = vrot.lane.b32.xlu0 %v423, 96
    %v810 = vpop.permute.xlu0 %809
    %811 = vrot.lane.b32.xlu0 %v427, 96
    %v812 = vpop.permute.xlu0 %811
    %813 = vrot.lane.b32.xlu0 %v431, 96
    %v814 = vpop.permute.xlu0 %813
    %815 = vrot.lane.b32.xlu0 %v420, 96
    %v816 = vpop.permute.xlu0 %815
    %817 = vrot.lane.b32.xlu0 %v424, 96
    %v818 = vpop.permute.xlu0 %817
    %819 = vrot.lane.b32.xlu0 %v428, 96
    %v820 = vpop.permute.xlu0 %819
    %821 = vrot.lane.b32.xlu0 %v432, 96
    %v822 = vpop.permute.xlu0 %821
    %823 = vrot.lane.b32.xlu0 %v421, 96
    %v824 = vpop.permute.xlu0 %823
    %825 = vrot.lane.b32.xlu0 %v425, 96
    %v826 = vpop.permute.xlu0 %825
    %827 = vrot.lane.b32.xlu0 %v429, 96
    %v828 = vpop.permute.xlu0 %827
    %829 = vrot.lane.b32.xlu0 %v433, 96
    %v830 = vpop.permute.xlu0 %829
    %831 = vrot.lane.b32.xlu0 %v422, 96
    %v832 = vpop.permute.xlu0 %831
    %833 = vrot.lane.b32.xlu0 %v426, 96
    %v834 = vpop.permute.xlu0 %833
    %835 = vrot.lane.b32.xlu0 %v430, 96
    %v836 = vpop.permute.xlu0 %835
    %837 = vrot.lane.b32.xlu0 %v434, 96
    %v838 = vpop.permute.xlu0 %837
    %v839 = vsel %vm593, %v824, %v832
    %v840 = vsel %vm593, %v826, %v834
    %v841 = vsel %vm593, %v828, %v836
    %v842 = vsel %vm593, %v830, %v838
    %v843 = vsel %vm593, %v816, %v824
    %v844 = vsel %vm593, %v818, %v826
    %v845 = vsel %vm593, %v820, %v828
    %v846 = vsel %vm593, %v822, %v830
    %v847 = vsel %vm593, %v808, %v816
    %v848 = vsel %vm593, %v810, %v818
    %v849 = vsel %vm593, %v812, %v820
    %v850 = vsel %vm593, %v814, %v822
    %v851 = vsel %vm593, %v832, %v808
    %v852 = vsel %vm593, %v834, %v810
    %v853 = vsel %vm593, %v836, %v812
    %v854 = vsel %vm593, %v838, %v814
    %s855 = scalar_lea.vmem %s3, 5
    %v856 = vld [vmem:[%s855] ss:$8 sm:$0xf]
    %v858 = vlaneseq
    %v859 = vshrl.u32 %v858, 7
    %v860 = vsub.s32 0, %v859
    %v861 = vrot.slane %v856, %v860
    %v862 = vlaneseq
    %v863 = vshrl.u32 %v862, 7
    %v864 = vsub.s32 1, %v863
    %v865 = vrot.slane %v856, %v864
    %v866 = vlaneseq
    %v867 = vshrl.u32 %v866, 7
    %v868 = vsub.s32 2, %v867
    %v869 = vrot.slane %v856, %v868
    %v870 = vlaneseq
    %v871 = vshrl.u32 %v870, 7
    %v872 = vsub.s32 3, %v871
    %v873 = vrot.slane %v856, %v872
    %v878 = vmul.f32 %v803, %v861
    %v879 = vmul.f32 %v799, %v865
    %v880 = vmul.f32 %v795, %v869
    %v881 = vmul.f32 %v791, %v873
    %v882 = vmul.f32 %v804, %v861
    %v883 = vmul.f32 %v800, %v865
    %v884 = vmul.f32 %v796, %v869
    %v885 = vmul.f32 %v792, %v873
    %v886 = vmul.f32 %v805, %v861
    %v887 = vmul.f32 %v801, %v865
    %v888 = vmul.f32 %v797, %v869
    %v889 = vmul.f32 %v793, %v873
    %v890 = vmul.f32 %v806, %v861
    %v891 = vmul.f32 %v802, %v865
    %v892 = vmul.f32 %v798, %v869
    %v893 = vmul.f32 %v794, %v873
    %s894 = scalar_lea.vmem %s3, 6
    %v895 = vld [vmem:[%s894] ss:$8 sm:$0xf]
    %v897 = vlaneseq
    %v898 = vshrl.u32 %v897, 7
    %v899 = vsub.s32 0, %v898
    %v900 = vrot.slane %v895, %v899
    %v901 = vlaneseq
    %v902 = vshrl.u32 %v901, 7
    %v903 = vsub.s32 1, %v902
    %v904 = vrot.slane %v895, %v903
    %v905 = vlaneseq
    %v906 = vshrl.u32 %v905, 7
    %v907 = vsub.s32 2, %v906
    %v908 = vrot.slane %v895, %v907
    %v909 = vlaneseq
    %v910 = vshrl.u32 %v909, 7
    %v911 = vsub.s32 3, %v910
    %v912 = vrot.slane %v895, %v911
    %v917 = vmul.f32 %v419, %v900
    %v918 = vmul.f32 %v420, %v904
    %v919 = vmul.f32 %v421, %v908
    %v920 = vmul.f32 %v422, %v912
    %v921 = vmul.f32 %v423, %v900
    %v922 = vmul.f32 %v424, %v904
    %v923 = vmul.f32 %v425, %v908
    %v924 = vmul.f32 %v426, %v912
    %v925 = vmul.f32 %v427, %v900
    %v926 = vmul.f32 %v428, %v904
    %v927 = vmul.f32 %v429, %v908
    %v928 = vmul.f32 %v430, %v912
    %v929 = vmul.f32 %v431, %v900
    %v930 = vmul.f32 %v432, %v904
    %v931 = vmul.f32 %v433, %v908
    %v932 = vmul.f32 %v434, %v912
    %v933 = vadd.f32 %v878, %v917
    %v934 = vadd.f32 %v879, %v918
    %v935 = vadd.f32 %v880, %v919
    %v936 = vadd.f32 %v881, %v920
    %v937 = vadd.f32 %v882, %v921
    %v938 = vadd.f32 %v883, %v922
    %v939 = vadd.f32 %v884, %v923
    %v940 = vadd.f32 %v885, %v924
    %v941 = vadd.f32 %v886, %v925
    %v942 = vadd.f32 %v887, %v926
    %v943 = vadd.f32 %v888, %v927
    %v944 = vadd.f32 %v889, %v928
    %v945 = vadd.f32 %v890, %v929
    %v946 = vadd.f32 %v891, %v930
    %v947 = vadd.f32 %v892, %v931
    %v948 = vadd.f32 %v893, %v932
    %s949 = scalar_lea.vmem %s3, 7
    %v950 = vld [vmem:[%s949] ss:$8 sm:$0xf]
    %v952 = vlaneseq
    %v953 = vshrl.u32 %v952, 7
    %v954 = vsub.s32 0, %v953
    %v955 = vrot.slane %v950, %v954
    %v956 = vlaneseq
    %v957 = vshrl.u32 %v956, 7
    %v958 = vsub.s32 1, %v957
    %v959 = vrot.slane %v950, %v958
    %v960 = vlaneseq
    %v961 = vshrl.u32 %v960, 7
    %v962 = vsub.s32 2, %v961
    %v963 = vrot.slane %v950, %v962
    %v964 = vlaneseq
    %v965 = vshrl.u32 %v964, 7
    %v966 = vsub.s32 3, %v965
    %v967 = vrot.slane %v950, %v966
    %v972 = vmul.f32 %v847, %v955
    %v973 = vmul.f32 %v843, %v959
    %v974 = vmul.f32 %v839, %v963
    %v975 = vmul.f32 %v851, %v967
    %v976 = vmul.f32 %v848, %v955
    %v977 = vmul.f32 %v844, %v959
    %v978 = vmul.f32 %v840, %v963
    %v979 = vmul.f32 %v852, %v967
    %v980 = vmul.f32 %v849, %v955
    %v981 = vmul.f32 %v845, %v959
    %v982 = vmul.f32 %v841, %v963
    %v983 = vmul.f32 %v853, %v967
    %v984 = vmul.f32 %v850, %v955
    %v985 = vmul.f32 %v846, %v959
    %v986 = vmul.f32 %v842, %v963
    %v987 = vmul.f32 %v854, %v967
    %v988 = vadd.f32 %v933, %v972
    %v989 = vadd.f32 %v934, %v973
    %v990 = vadd.f32 %v935, %v974
    %v991 = vadd.f32 %v936, %v975
    %v992 = vadd.f32 %v937, %v976
    %v993 = vadd.f32 %v938, %v977
    %v994 = vadd.f32 %v939, %v978
    %v995 = vadd.f32 %v940, %v979
    %v996 = vadd.f32 %v941, %v980
    %v997 = vadd.f32 %v942, %v981
    %v998 = vadd.f32 %v943, %v982
    %v999 = vadd.f32 %v944, %v983
    %v1000 = vadd.f32 %v945, %v984
    %v1001 = vadd.f32 %v946, %v985
    %v1002 = vadd.f32 %v947, %v986
    %v1003 = vadd.f32 %v948, %v987
    %v1004 = vadd.f32 %v743, %v988
    %v1005 = vadd.f32 %v744, %v989
    %v1006 = vadd.f32 %v745, %v990
    %v1007 = vadd.f32 %v746, %v991
    %v1008 = vadd.f32 %v747, %v992
    %v1009 = vadd.f32 %v748, %v993
    %v1010 = vadd.f32 %v749, %v994
    %v1011 = vadd.f32 %v750, %v995
    %v1012 = vadd.f32 %v751, %v996
    %v1013 = vadd.f32 %v752, %v997
    %v1014 = vadd.f32 %v753, %v998
    %v1015 = vadd.f32 %v754, %v999
    %v1016 = vadd.f32 %v755, %v1000
    %v1017 = vadd.f32 %v756, %v1001
    %v1018 = vadd.f32 %v757, %v1002
    %v1019 = vadd.f32 %v758, %v1003
    %v1020 = vrot.slane %v419, 1
    %v1021 = vrot.slane %v420, 1
    %v1022 = vrot.slane %v421, 1
    %v1023 = vrot.slane %v422, 1
    %v1024 = vrot.slane %v423, 1
    %v1025 = vrot.slane %v424, 1
    %v1026 = vrot.slane %v425, 1
    %v1027 = vrot.slane %v426, 1
    %v1028 = vrot.slane %v427, 1
    %v1029 = vrot.slane %v428, 1
    %v1030 = vrot.slane %v429, 1
    %v1031 = vrot.slane %v430, 1
    %v1032 = vrot.slane %v431, 1
    %v1033 = vrot.slane %v432, 1
    %v1034 = vrot.slane %v433, 1
    %v1035 = vrot.slane %v434, 1
    %vm1036 = vcmp.lt.s32.totalorder %v452, 7
    %v1037 = vsel %vm1036, %v1028, %v1032
    %v1038 = vsel %vm1036, %v1029, %v1033
    %v1039 = vsel %vm1036, %v1030, %v1034
    %v1040 = vsel %vm1036, %v1031, %v1035
    %v1041 = vsel %vm1036, %v1024, %v1028
    %v1042 = vsel %vm1036, %v1025, %v1029
    %v1043 = vsel %vm1036, %v1026, %v1030
    %v1044 = vsel %vm1036, %v1027, %v1031
    %v1045 = vsel %vm1036, %v1020, %v1024
    %v1046 = vsel %vm1036, %v1021, %v1025
    %v1047 = vsel %vm1036, %v1022, %v1026
    %v1048 = vsel %vm1036, %v1023, %v1027
    %v1049 = vsel %vm1036, %v1032, %v1020
    %v1050 = vsel %vm1036, %v1033, %v1021
    %v1051 = vsel %vm1036, %v1034, %v1022
    %v1052 = vsel %vm1036, %v1035, %v1023
    %v1053 = vld [vmem:[%s6] sm:$0xff]
    %v1054 = vld [vmem:[%s6 + $0x8] sm:$0xff]
    %v1055 = vld [vmem:[%s6 + $0x10] sm:$0xff]
    %v1056 = vld [vmem:[%s6 + $0x18] sm:$0xff]
    %1058 = vset.pattern.permute.xlu0 0
    %1059 = vperm.xlu0 %1058, %v1053
    %v1060 = vpop.permute.xlu0 %1059
    %1063 = vset.pattern.permute.xlu0 0
    %1064 = vperm.xlu0 %1063, %v1054
    %v1065 = vpop.permute.xlu0 %1064
    %1068 = vset.pattern.permute.xlu0 0
    %1069 = vperm.xlu0 %1068, %v1055
    %v1070 = vpop.permute.xlu0 %1069
    %1073 = vset.pattern.permute.xlu0 0
    %1074 = vperm.xlu0 %1073, %v1056
    %v1075 = vpop.permute.xlu0 %1074
    %v1077 = vmul.f32 %v1045, %v1060
    %v1078 = vmul.f32 %v1046, %v1060
    %v1079 = vmul.f32 %v1047, %v1060
    %v1080 = vmul.f32 %v1048, %v1060
    %v1081 = vmul.f32 %v1041, %v1065
    %v1082 = vmul.f32 %v1042, %v1065
    %v1083 = vmul.f32 %v1043, %v1065
    %v1084 = vmul.f32 %v1044, %v1065
    %v1085 = vmul.f32 %v1037, %v1070
    %v1086 = vmul.f32 %v1038, %v1070
    %v1087 = vmul.f32 %v1039, %v1070
    %v1088 = vmul.f32 %v1040, %v1070
    %v1089 = vmul.f32 %v1049, %v1075
    %v1090 = vmul.f32 %v1050, %v1075
    %v1091 = vmul.f32 %v1051, %v1075
    %v1092 = vmul.f32 %v1052, %v1075
    %1093 = vrot.lane.b32.xlu0 %v1077, 32
    %v1094 = vpop.permute.xlu0 %1093
    %1095 = vrot.lane.b32.xlu0 %v1081, 32
    %v1096 = vpop.permute.xlu0 %1095
    %1097 = vrot.lane.b32.xlu0 %v1085, 32
    %v1098 = vpop.permute.xlu0 %1097
    %1099 = vrot.lane.b32.xlu0 %v1089, 32
    %v1100 = vpop.permute.xlu0 %1099
    %1101 = vrot.lane.b32.xlu0 %v1078, 32
    %v1102 = vpop.permute.xlu0 %1101
    %1103 = vrot.lane.b32.xlu0 %v1082, 32
    %v1104 = vpop.permute.xlu0 %1103
    %1105 = vrot.lane.b32.xlu0 %v1086, 32
    %v1106 = vpop.permute.xlu0 %1105
    %1107 = vrot.lane.b32.xlu0 %v1090, 32
    %v1108 = vpop.permute.xlu0 %1107
    %1109 = vrot.lane.b32.xlu0 %v1079, 32
    %v1110 = vpop.permute.xlu0 %1109
    %1111 = vrot.lane.b32.xlu0 %v1083, 32
    %v1112 = vpop.permute.xlu0 %1111
    %1113 = vrot.lane.b32.xlu0 %v1087, 32
    %v1114 = vpop.permute.xlu0 %1113
    %1115 = vrot.lane.b32.xlu0 %v1091, 32
    %v1116 = vpop.permute.xlu0 %1115
    %1117 = vrot.lane.b32.xlu0 %v1080, 32
    %v1118 = vpop.permute.xlu0 %1117
    %1119 = vrot.lane.b32.xlu0 %v1084, 32
    %v1120 = vpop.permute.xlu0 %1119
    %1121 = vrot.lane.b32.xlu0 %v1088, 32
    %v1122 = vpop.permute.xlu0 %1121
    %1123 = vrot.lane.b32.xlu0 %v1092, 32
    %v1124 = vpop.permute.xlu0 %1123
    %v1125 = vsel %vm544, %v1110, %v1118
    %v1126 = vsel %vm544, %v1112, %v1120
    %v1127 = vsel %vm544, %v1114, %v1122
    %v1128 = vsel %vm544, %v1116, %v1124
    %v1129 = vsel %vm544, %v1102, %v1110
    %v1130 = vsel %vm544, %v1104, %v1112
    %v1131 = vsel %vm544, %v1106, %v1114
    %v1132 = vsel %vm544, %v1108, %v1116
    %v1133 = vsel %vm544, %v1094, %v1102
    %v1134 = vsel %vm544, %v1096, %v1104
    %v1135 = vsel %vm544, %v1098, %v1106
    %v1136 = vsel %vm544, %v1100, %v1108
    %v1137 = vsel %vm544, %v1118, %v1094
    %v1138 = vsel %vm544, %v1120, %v1096
    %v1139 = vsel %vm544, %v1122, %v1098
    %v1140 = vsel %vm544, %v1124, %v1100
    %1141 = vrot.lane.b32.xlu0 %v1077, 96
    %v1142 = vpop.permute.xlu0 %1141
    %1143 = vrot.lane.b32.xlu0 %v1081, 96
    %v1144 = vpop.permute.xlu0 %1143
    %1145 = vrot.lane.b32.xlu0 %v1085, 96
    %v1146 = vpop.permute.xlu0 %1145
    %1147 = vrot.lane.b32.xlu0 %v1089, 96
    %v1148 = vpop.permute.xlu0 %1147
    %1149 = vrot.lane.b32.xlu0 %v1078, 96
    %v1150 = vpop.permute.xlu0 %1149
    %1151 = vrot.lane.b32.xlu0 %v1082, 96
    %v1152 = vpop.permute.xlu0 %1151
    %1153 = vrot.lane.b32.xlu0 %v1086, 96
    %v1154 = vpop.permute.xlu0 %1153
    %1155 = vrot.lane.b32.xlu0 %v1090, 96
    %v1156 = vpop.permute.xlu0 %1155
    %1157 = vrot.lane.b32.xlu0 %v1079, 96
    %v1158 = vpop.permute.xlu0 %1157
    %1159 = vrot.lane.b32.xlu0 %v1083, 96
    %v1160 = vpop.permute.xlu0 %1159
    %1161 = vrot.lane.b32.xlu0 %v1087, 96
    %v1162 = vpop.permute.xlu0 %1161
    %1163 = vrot.lane.b32.xlu0 %v1091, 96
    %v1164 = vpop.permute.xlu0 %1163
    %1165 = vrot.lane.b32.xlu0 %v1080, 96
    %v1166 = vpop.permute.xlu0 %1165
    %1167 = vrot.lane.b32.xlu0 %v1084, 96
    %v1168 = vpop.permute.xlu0 %1167
    %1169 = vrot.lane.b32.xlu0 %v1088, 96
    %v1170 = vpop.permute.xlu0 %1169
    %1171 = vrot.lane.b32.xlu0 %v1092, 96
    %v1172 = vpop.permute.xlu0 %1171
    %v1173 = vsel %vm593, %v1158, %v1166
    %v1174 = vsel %vm593, %v1160, %v1168
    %v1175 = vsel %vm593, %v1162, %v1170
    %v1176 = vsel %vm593, %v1164, %v1172
    %v1177 = vsel %vm593, %v1150, %v1158
    %v1178 = vsel %vm593, %v1152, %v1160
    %v1179 = vsel %vm593, %v1154, %v1162
    %v1180 = vsel %vm593, %v1156, %v1164
    %v1181 = vsel %vm593, %v1142, %v1150
    %v1182 = vsel %vm593, %v1144, %v1152
    %v1183 = vsel %vm593, %v1146, %v1154
    %v1184 = vsel %vm593, %v1148, %v1156
    %v1185 = vsel %vm593, %v1166, %v1142
    %v1186 = vsel %vm593, %v1168, %v1144
    %v1187 = vsel %vm593, %v1170, %v1146
    %v1188 = vsel %vm593, %v1172, %v1148
    %s1189 = scalar_lea.vmem %s3, 32
    %v1190 = vld [vmem:[%s1189] ss:$8 sm:$0xf]
    %v1192 = vlaneseq
    %v1193 = vshrl.u32 %v1192, 7
    %v1194 = vsub.s32 0, %v1193
    %v1195 = vrot.slane %v1190, %v1194
    %v1196 = vlaneseq
    %v1197 = vshrl.u32 %v1196, 7
    %v1198 = vsub.s32 1, %v1197
    %v1199 = vrot.slane %v1190, %v1198
    %v1200 = vlaneseq
    %v1201 = vshrl.u32 %v1200, 7
    %v1202 = vsub.s32 2, %v1201
    %v1203 = vrot.slane %v1190, %v1202
    %v1204 = vlaneseq
    %v1205 = vshrl.u32 %v1204, 7
    %v1206 = vsub.s32 3, %v1205
    %v1207 = vrot.slane %v1190, %v1206
    %v1212 = vmul.f32 %v1137, %v1195
    %v1213 = vmul.f32 %v1133, %v1199
    %v1214 = vmul.f32 %v1129, %v1203
    %v1215 = vmul.f32 %v1125, %v1207
    %v1216 = vmul.f32 %v1138, %v1195
    %v1217 = vmul.f32 %v1134, %v1199
    %v1218 = vmul.f32 %v1130, %v1203
    %v1219 = vmul.f32 %v1126, %v1207
    %v1220 = vmul.f32 %v1139, %v1195
    %v1221 = vmul.f32 %v1135, %v1199
    %v1222 = vmul.f32 %v1131, %v1203
    %v1223 = vmul.f32 %v1127, %v1207
    %v1224 = vmul.f32 %v1140, %v1195
    %v1225 = vmul.f32 %v1136, %v1199
    %v1226 = vmul.f32 %v1132, %v1203
    %v1227 = vmul.f32 %v1128, %v1207
    %s1228 = scalar_lea.vmem %s3, 33
    %v1229 = vld [vmem:[%s1228] ss:$8 sm:$0xf]
    %v1231 = vlaneseq
    %v1232 = vshrl.u32 %v1231, 7
    %v1233 = vsub.s32 0, %v1232
    %v1234 = vrot.slane %v1229, %v1233
    %v1235 = vlaneseq
    %v1236 = vshrl.u32 %v1235, 7
    %v1237 = vsub.s32 1, %v1236
    %v1238 = vrot.slane %v1229, %v1237
    %v1239 = vlaneseq
    %v1240 = vshrl.u32 %v1239, 7
    %v1241 = vsub.s32 2, %v1240
    %v1242 = vrot.slane %v1229, %v1241
    %v1243 = vlaneseq
    %v1244 = vshrl.u32 %v1243, 7
    %v1245 = vsub.s32 3, %v1244
    %v1246 = vrot.slane %v1229, %v1245
    %v1251 = vmul.f32 %v1077, %v1234
    %v1252 = vmul.f32 %v1078, %v1238
    %v1253 = vmul.f32 %v1079, %v1242
    %v1254 = vmul.f32 %v1080, %v1246
    %v1255 = vmul.f32 %v1081, %v1234
    %v1256 = vmul.f32 %v1082, %v1238
    %v1257 = vmul.f32 %v1083, %v1242
    %v1258 = vmul.f32 %v1084, %v1246
    %v1259 = vmul.f32 %v1085, %v1234
    %v1260 = vmul.f32 %v1086, %v1238
    %v1261 = vmul.f32 %v1087, %v1242
    %v1262 = vmul.f32 %v1088, %v1246
    %v1263 = vmul.f32 %v1089, %v1234
    %v1264 = vmul.f32 %v1090, %v1238
    %v1265 = vmul.f32 %v1091, %v1242
    %v1266 = vmul.f32 %v1092, %v1246
    %v1267 = vadd.f32 %v1212, %v1251
    %v1268 = vadd.f32 %v1213, %v1252
    %v1269 = vadd.f32 %v1214, %v1253
    %v1270 = vadd.f32 %v1215, %v1254
    %v1271 = vadd.f32 %v1216, %v1255
    %v1272 = vadd.f32 %v1217, %v1256
    %v1273 = vadd.f32 %v1218, %v1257
    %v1274 = vadd.f32 %v1219, %v1258
    %v1275 = vadd.f32 %v1220, %v1259
    %v1276 = vadd.f32 %v1221, %v1260
    %v1277 = vadd.f32 %v1222, %v1261
    %v1278 = vadd.f32 %v1223, %v1262
    %v1279 = vadd.f32 %v1224, %v1263
    %v1280 = vadd.f32 %v1225, %v1264
    %v1281 = vadd.f32 %v1226, %v1265
    %v1282 = vadd.f32 %v1227, %v1266
    %s1283 = scalar_lea.vmem %s3, 34
    %v1284 = vld [vmem:[%s1283] ss:$8 sm:$0xf]
    %v1286 = vlaneseq
    %v1287 = vshrl.u32 %v1286, 7
    %v1288 = vsub.s32 0, %v1287
    %v1289 = vrot.slane %v1284, %v1288
    %v1290 = vlaneseq
    %v1291 = vshrl.u32 %v1290, 7
    %v1292 = vsub.s32 1, %v1291
    %v1293 = vrot.slane %v1284, %v1292
    %v1294 = vlaneseq
    %v1295 = vshrl.u32 %v1294, 7
    %v1296 = vsub.s32 2, %v1295
    %v1297 = vrot.slane %v1284, %v1296
    %v1298 = vlaneseq
    %v1299 = vshrl.u32 %v1298, 7
    %v1300 = vsub.s32 3, %v1299
    %v1301 = vrot.slane %v1284, %v1300
    %v1306 = vmul.f32 %v1181, %v1289
    %v1307 = vmul.f32 %v1177, %v1293
    %v1308 = vmul.f32 %v1173, %v1297
    %v1309 = vmul.f32 %v1185, %v1301
    %v1310 = vmul.f32 %v1182, %v1289
    %v1311 = vmul.f32 %v1178, %v1293
    %v1312 = vmul.f32 %v1174, %v1297
    %v1313 = vmul.f32 %v1186, %v1301
    %v1314 = vmul.f32 %v1183, %v1289
    %v1315 = vmul.f32 %v1179, %v1293
    %v1316 = vmul.f32 %v1175, %v1297
    %v1317 = vmul.f32 %v1187, %v1301
    %v1318 = vmul.f32 %v1184, %v1289
    %v1319 = vmul.f32 %v1180, %v1293
    %v1320 = vmul.f32 %v1176, %v1297
    %v1321 = vmul.f32 %v1188, %v1301
    %v1322 = vadd.f32 %v1267, %v1306
    %v1323 = vadd.f32 %v1268, %v1307
    %v1324 = vadd.f32 %v1269, %v1308
    %v1325 = vadd.f32 %v1270, %v1309
    %v1326 = vadd.f32 %v1271, %v1310
    %v1327 = vadd.f32 %v1272, %v1311
    %v1328 = vadd.f32 %v1273, %v1312
    %v1329 = vadd.f32 %v1274, %v1313
    %v1330 = vadd.f32 %v1275, %v1314
    %v1331 = vadd.f32 %v1276, %v1315
    %v1332 = vadd.f32 %v1277, %v1316
    %v1333 = vadd.f32 %v1278, %v1317
    %v1334 = vadd.f32 %v1279, %v1318
    %v1335 = vadd.f32 %v1280, %v1319
    %v1336 = vadd.f32 %v1281, %v1320
    %v1337 = vadd.f32 %v1282, %v1321
    %v1338 = vadd.f32 %v1004, %v1322
    %v1339 = vadd.f32 %v1005, %v1323
    %v1340 = vadd.f32 %v1006, %v1324
    %v1341 = vadd.f32 %v1007, %v1325
    %v1342 = vadd.f32 %v1008, %v1326
    %v1343 = vadd.f32 %v1009, %v1327
    %v1344 = vadd.f32 %v1010, %v1328
    %v1345 = vadd.f32 %v1011, %v1329
    %v1346 = vadd.f32 %v1012, %v1330
    %v1347 = vadd.f32 %v1013, %v1331
    %v1348 = vadd.f32 %v1014, %v1332
    %v1349 = vadd.f32 %v1015, %v1333
    %v1350 = vadd.f32 %v1016, %v1334
    %v1351 = vadd.f32 %v1017, %v1335
    %v1352 = vadd.f32 %v1018, %v1336
    %v1353 = vadd.f32 %v1019, %v1337
    %s1354 = scalar_lea.vmem %s3, 1
    %v1355 = vld [vmem:[%s1354] ss:$8 sm:$0xf]
    %v1357 = vlaneseq
    %v1358 = vshrl.u32 %v1357, 7
    %v1359 = vsub.s32 0, %v1358
    %v1360 = vrot.slane %v1355, %v1359
    %v1361 = vlaneseq
    %v1362 = vshrl.u32 %v1361, 7
    %v1363 = vsub.s32 1, %v1362
    %v1364 = vrot.slane %v1355, %v1363
    %v1365 = vlaneseq
    %v1366 = vshrl.u32 %v1365, 7
    %v1367 = vsub.s32 2, %v1366
    %v1368 = vrot.slane %v1355, %v1367
    %v1369 = vlaneseq
    %v1370 = vshrl.u32 %v1369, 7
    %v1371 = vsub.s32 3, %v1370
    %v1372 = vrot.slane %v1355, %v1371
    %v1377 = vadd.f32 %v1338, %v1360
    %v1378 = vadd.f32 %v1339, %v1364
    %v1379 = vadd.f32 %v1340, %v1368
    %v1380 = vadd.f32 %v1341, %v1372
    %v1381 = vadd.f32 %v1342, %v1360
    %v1382 = vadd.f32 %v1343, %v1364
    %v1383 = vadd.f32 %v1344, %v1368
    %v1384 = vadd.f32 %v1345, %v1372
    %v1385 = vadd.f32 %v1346, %v1360
    %v1386 = vadd.f32 %v1347, %v1364
    %v1387 = vadd.f32 %v1348, %v1368
    %v1388 = vadd.f32 %v1349, %v1372
    %v1389 = vadd.f32 %v1350, %v1360
    %v1390 = vadd.f32 %v1351, %v1364
    %v1391 = vadd.f32 %v1352, %v1368
    %v1392 = vadd.f32 %v1353, %v1372
    %v1393 = vmax.f32 %v1377, 0.0
    %v1394 = vmax.f32 %v1378, 0.0
    %v1395 = vmax.f32 %v1379, 0.0
    %v1396 = vmax.f32 %v1380, 0.0
    %v1397 = vmax.f32 %v1381, 0.0
    %v1398 = vmax.f32 %v1382, 0.0
    %v1399 = vmax.f32 %v1383, 0.0
    %v1400 = vmax.f32 %v1384, 0.0
    %v1401 = vmax.f32 %v1385, 0.0
    %v1402 = vmax.f32 %v1386, 0.0
    %v1403 = vmax.f32 %v1387, 0.0
    %v1404 = vmax.f32 %v1388, 0.0
    %v1405 = vmax.f32 %v1389, 0.0
    %v1406 = vmax.f32 %v1390, 0.0
    %v1407 = vmax.f32 %v1391, 0.0
    %v1408 = vmax.f32 %v1392, 0.0
    %v1409 = vmin.f32 %v1393, 6.0
    %v1410 = vmin.f32 %v1394, 6.0
    %v1411 = vmin.f32 %v1395, 6.0
    %v1412 = vmin.f32 %v1396, 6.0
    %v1413 = vmin.f32 %v1397, 6.0
    %v1414 = vmin.f32 %v1398, 6.0
    %v1415 = vmin.f32 %v1399, 6.0
    %v1416 = vmin.f32 %v1400, 6.0
    %v1417 = vmin.f32 %v1401, 6.0
    %v1418 = vmin.f32 %v1402, 6.0
    %v1419 = vmin.f32 %v1403, 6.0
    %v1420 = vmin.f32 %v1404, 6.0
    %v1421 = vmin.f32 %v1405, 6.0
    %v1422 = vmin.f32 %v1406, 6.0
    %v1423 = vmin.f32 %v1407, 6.0
    %v1424 = vmin.f32 %v1408, 6.0
    %v1425 = vpack.c.bf16 %v1413, %v1409
    %v1426 = vpack.c.bf16 %v1414, %v1410
    %v1427 = vpack.c.bf16 %v1415, %v1411
    %v1428 = vpack.c.bf16 %v1416, %v1412
    %v1429 = vpack.c.bf16 %v1421, %v1417
    %v1430 = vpack.c.bf16 %v1422, %v1418
    %v1431 = vpack.c.bf16 %v1423, %v1419
    %v1432 = vpack.c.bf16 %v1424, %v1420
    %v1433 = vld [vmem:[#allocation7] sm:$0xf]
    %v1434 = vld [vmem:[#allocation7 + $0x4] sm:$0xf]
    %v1435 = vld [vmem:[#allocation7 + $0x8] sm:$0xf]
    %v1436 = vld [vmem:[#allocation7 + $0xc] sm:$0xf]
    %v1437 = vld [vmem:[#allocation7 + $0x10] sm:$0xf]
    %v1438 = vld [vmem:[#allocation7 + $0x14] sm:$0xf]
    %v1439 = vld [vmem:[#allocation7 + $0x18] sm:$0xf]
    %v1440 = vld [vmem:[#allocation7 + $0x1c] sm:$0xf]
    %v1441 = vld [vmem:[#allocation7 + $0x20] sm:$0xf]
    %v1442 = vld [vmem:[#allocation7 + $0x24] sm:$0xf]
    %v1443 = vld [vmem:[#allocation7 + $0x28] sm:$0xf]
    %v1444 = vld [vmem:[#allocation7 + $0x2c] sm:$0xf]
    %v1445 = vld [vmem:[#allocation7 + $0x30] sm:$0xf]
    %v1446 = vld [vmem:[#allocation7 + $0x34] sm:$0xf]
    %v1447 = vld [vmem:[#allocation7 + $0x38] sm:$0xf]
    %v1448 = vld [vmem:[#allocation7 + $0x3c] sm:$0xf]
    %v1449 = vld [vmem:[#allocation7 + $0x40] sm:$0xf]
    %v1450 = vld [vmem:[#allocation7 + $0x44] sm:$0xf]
    %v1451 = vld [vmem:[#allocation7 + $0x48] sm:$0xf]
    %v1452 = vld [vmem:[#allocation7 + $0x4c] sm:$0xf]
    %v1453 = vld [vmem:[#allocation7 + $0x50] sm:$0xf]
    %v1454 = vld [vmem:[#allocation7 + $0x54] sm:$0xf]
    %v1455 = vld [vmem:[#allocation7 + $0x58] sm:$0xf]
    %v1456 = vld [vmem:[#allocation7 + $0x5c] sm:$0xf]
    %v1457 = vld [vmem:[#allocation7 + $0x60] sm:$0xf]
    %v1458 = vld [vmem:[#allocation7 + $0x64] sm:$0xf]
    %v1459 = vld [vmem:[#allocation7 + $0x68] sm:$0xf]
    %v1460 = vld [vmem:[#allocation7 + $0x6c] sm:$0xf]
    %v1461 = vld [vmem:[#allocation7 + $0x70] sm:$0xf]
    %v1462 = vld [vmem:[#allocation7 + $0x74] sm:$0xf]
    %v1463 = vld [vmem:[#allocation7 + $0x78] sm:$0xf]
    %v1464 = vld [vmem:[#allocation7 + $0x7c] sm:$0xf]
    %v1465 = vld [vmem:[#allocation7 + $0x80] sm:$0xf]
    %v1466 = vld [vmem:[#allocation7 + $0x84] sm:$0xf]
    %v1467 = vld [vmem:[#allocation7 + $0x88] sm:$0xf]
    %v1468 = vld [vmem:[#allocation7 + $0x8c] sm:$0xf]
    %v1469 = vld [vmem:[#allocation7 + $0x90] sm:$0xf]
    %v1470 = vld [vmem:[#allocation7 + $0x94] sm:$0xf]
    %v1471 = vld [vmem:[#allocation7 + $0x98] sm:$0xf]
    %v1472 = vld [vmem:[#allocation7 + $0x9c] sm:$0xf]
    %v1473 = vld [vmem:[#allocation7 + $0xa0] sm:$0xf]
    %v1474 = vld [vmem:[#allocation7 + $0xa4] sm:$0xf]
    %v1475 = vld [vmem:[#allocation7 + $0xa8] sm:$0xf]
    %v1476 = vld [vmem:[#allocation7 + $0xac] sm:$0xf]
    %v1477 = vld [vmem:[#allocation7 + $0xb0] sm:$0xf]
    %v1478 = vld [vmem:[#allocation7 + $0xb4] sm:$0xf]
    %v1479 = vld [vmem:[#allocation7 + $0xb8] sm:$0xf]
    %v1480 = vld [vmem:[#allocation7 + $0xbc] sm:$0xf]
    %v1481 = vld [vmem:[#allocation7 + $0xc0] sm:$0xf]
    %v1482 = vld [vmem:[#allocation7 + $0xc4] sm:$0xf]
    %v1483 = vld [vmem:[#allocation7 + $0xc8] sm:$0xf]
    %v1484 = vld [vmem:[#allocation7 + $0xcc] sm:$0xf]
    %v1485 = vld [vmem:[#allocation7 + $0xd0] sm:$0xf]
    %v1486 = vld [vmem:[#allocation7 + $0xd4] sm:$0xf]
    %v1487 = vld [vmem:[#allocation7 + $0xd8] sm:$0xf]
    %v1488 = vld [vmem:[#allocation7 + $0xdc] sm:$0xf]
    %v1489 = vld [vmem:[#allocation7 + $0xe0] sm:$0xf]
    %v1490 = vld [vmem:[#allocation7 + $0xe4] sm:$0xf]
    %v1491 = vld [vmem:[#allocation7 + $0xe8] sm:$0xf]
    %v1492 = vld [vmem:[#allocation7 + $0xec] sm:$0xf]
    %v1493 = vld [vmem:[#allocation7 + $0xf0] sm:$0xf]
    %v1494 = vld [vmem:[#allocation7 + $0xf4] sm:$0xf]
    %v1495 = vld [vmem:[#allocation7 + $0xf8] sm:$0xf]
    %v1496 = vld [vmem:[#allocation7 + $0xfc] sm:$0xf]
    %v1561 = vunpack.c.l.b16 %v1433
    %v1562 = vunpack.c.l.b16 %v1434
    %v1563 = vunpack.c.l.b16 %v1435
    %v1564 = vunpack.c.l.b16 %v1436
    %v1565 = vunpack.c.l.b16 %v1437
    %v1566 = vunpack.c.l.b16 %v1438
    %v1567 = vunpack.c.l.b16 %v1439
    %v1568 = vunpack.c.l.b16 %v1440
    %v1569 = vunpack.c.l.b16 %v1441
    %v1570 = vunpack.c.l.b16 %v1442
    %v1571 = vunpack.c.l.b16 %v1443
    %v1572 = vunpack.c.l.b16 %v1444
    %v1573 = vunpack.c.l.b16 %v1445
    %v1574 = vunpack.c.l.b16 %v1446
    %v1575 = vunpack.c.l.b16 %v1447
    %v1576 = vunpack.c.l.b16 %v1448
    %v1577 = vunpack.c.l.b16 %v1449
    %v1578 = vunpack.c.l.b16 %v1450
    %v1579 = vunpack.c.l.b16 %v1451
    %v1580 = vunpack.c.l.b16 %v1452
    %v1581 = vunpack.c.l.b16 %v1453
    %v1582 = vunpack.c.l.b16 %v1454
    %v1583 = vunpack.c.l.b16 %v1455
    %v1584 = vunpack.c.l.b16 %v1456
    %v1585 = vunpack.c.l.b16 %v1457
    %v1586 = vunpack.c.l.b16 %v1458
    %v1587 = vunpack.c.l.b16 %v1459
    %v1588 = vunpack.c.l.b16 %v1460
    %v1589 = vunpack.c.l.b16 %v1461
    %v1590 = vunpack.c.l.b16 %v1462
    %v1591 = vunpack.c.l.b16 %v1463
    %v1592 = vunpack.c.l.b16 %v1464
    %v1593 = vunpack.c.l.b16 %v1465
    %v1594 = vunpack.c.l.b16 %v1466
    %v1595 = vunpack.c.l.b16 %v1467
    %v1596 = vunpack.c.l.b16 %v1468
    %v1597 = vunpack.c.l.b16 %v1469
    %v1598 = vunpack.c.l.b16 %v1470
    %v1599 = vunpack.c.l.b16 %v1471
    %v1600 = vunpack.c.l.b16 %v1472
    %v1601 = vunpack.c.l.b16 %v1473
    %v1602 = vunpack.c.l.b16 %v1474
    %v1603 = vunpack.c.l.b16 %v1475
    %v1604 = vunpack.c.l.b16 %v1476
    %v1605 = vunpack.c.l.b16 %v1477
    %v1606 = vunpack.c.l.b16 %v1478
    %v1607 = vunpack.c.l.b16 %v1479
    %v1608 = vunpack.c.l.b16 %v1480
    %v1609 = vunpack.c.l.b16 %v1481
    %v1610 = vunpack.c.l.b16 %v1482
    %v1611 = vunpack.c.l.b16 %v1483
    %v1612 = vunpack.c.l.b16 %v1484
    %v1613 = vunpack.c.l.b16 %v1485
    %v1614 = vunpack.c.l.b16 %v1486
    %v1615 = vunpack.c.l.b16 %v1487
    %v1616 = vunpack.c.l.b16 %v1488
    %v1617 = vunpack.c.l.b16 %v1489
    %v1618 = vunpack.c.l.b16 %v1490
    %v1619 = vunpack.c.l.b16 %v1491
    %v1620 = vunpack.c.l.b16 %v1492
    %v1621 = vunpack.c.l.b16 %v1493
    %v1622 = vunpack.c.l.b16 %v1494
    %v1623 = vunpack.c.l.b16 %v1495
    %v1624 = vunpack.c.l.b16 %v1496
    %v1625 = vpack.c.b16 %v1562, %v1561
    %v1626 = vpack.c.b16 %v1564, %v1563
    %v1627 = vpack.c.b16 %v1566, %v1565
    %v1628 = vpack.c.b16 %v1568, %v1567
    %v1629 = vpack.c.b16 %v1570, %v1569
    %v1630 = vpack.c.b16 %v1572, %v1571
    %v1631 = vpack.c.b16 %v1574, %v1573
    %v1632 = vpack.c.b16 %v1576, %v1575
    %v1633 = vpack.c.b16 %v1578, %v1577
    %v1634 = vpack.c.b16 %v1580, %v1579
    %v1635 = vpack.c.b16 %v1582, %v1581
    %v1636 = vpack.c.b16 %v1584, %v1583
    %v1637 = vpack.c.b16 %v1586, %v1585
    %v1638 = vpack.c.b16 %v1588, %v1587
    %v1639 = vpack.c.b16 %v1590, %v1589
    %v1640 = vpack.c.b16 %v1592, %v1591
    %v1641 = vpack.c.b16 %v1594, %v1593
    %v1642 = vpack.c.b16 %v1596, %v1595
    %v1643 = vpack.c.b16 %v1598, %v1597
    %v1644 = vpack.c.b16 %v1600, %v1599
    %v1645 = vpack.c.b16 %v1602, %v1601
    %v1646 = vpack.c.b16 %v1604, %v1603
    %v1647 = vpack.c.b16 %v1606, %v1605
    %v1648 = vpack.c.b16 %v1608, %v1607
    %v1649 = vpack.c.b16 %v1610, %v1609
    %v1650 = vpack.c.b16 %v1612, %v1611
    %v1651 = vpack.c.b16 %v1614, %v1613
    %v1652 = vpack.c.b16 %v1616, %v1615
    %v1653 = vpack.c.b16 %v1618, %v1617
    %v1654 = vpack.c.b16 %v1620, %v1619
    %v1655 = vpack.c.b16 %v1622, %v1621
    %v1656 = vpack.c.b16 %v1624, %v1623
    %1689 = vmatprep.subr.bf16.mxu0 0
    %1690 = vmatpush1.bf16.msra.mxu0 %v1625
    %1691 = vmatprep.subr.bf16.mxu0 0
    %1692 = vmatpush1.bf16.msra.mxu0 %v1626
    %1693 = vmatprep.subr.bf16.mxu0 0
    %1694 = vmatpush1.bf16.msra.mxu0 %v1627
    %1695 = vmatprep.subr.bf16.mxu0 0
    %1696 = vmatpush1.bf16.msra.mxu0 %v1628
    %1697 = vmatprep.subr.bf16.mxu0 0
    %1698 = vmatpush1.bf16.msra.mxu0 %v1629
    %1699 = vmatprep.subr.bf16.mxu0 0
    %1700 = vmatpush1.bf16.msra.mxu0 %v1630
    %1701 = vmatprep.subr.bf16.mxu0 0
    %1702 = vmatpush1.bf16.msra.mxu0 %v1631
    %1703 = vmatprep.subr.bf16.mxu0 0
    %1704 = vmatpush1.bf16.msra.mxu0 %v1632
    %1705 = vmatprep.subr.bf16.mxu0 0
    %1706 = vmatpush1.bf16.msra.mxu0 %v1633
    %1707 = vmatprep.subr.bf16.mxu0 0
    %1708 = vmatpush1.bf16.msra.mxu0 %v1634
    %1709 = vmatprep.subr.bf16.mxu0 0
    %1710 = vmatpush1.bf16.msra.mxu0 %v1635
    %1711 = vmatprep.subr.bf16.mxu0 0
    %1712 = vmatpush1.bf16.msra.mxu0 %v1636
    %1713 = vmatprep.subr.bf16.mxu0 0
    %1714 = vmatpush1.bf16.msra.mxu0 %v1637
    %1715 = vmatprep.subr.bf16.mxu0 0
    %1716 = vmatpush1.bf16.msra.mxu0 %v1638
    %1717 = vmatprep.subr.bf16.mxu0 0
    %1718 = vmatpush1.bf16.msra.mxu0 %v1639
    %1719 = vmatprep.subr.bf16.mxu0 0
    %1720 = vmatpush1.bf16.msra.mxu0 %v1640
    %1721 = vmatprep.mubr.bf16.mxu0 %v1426
    %1722 = vmatmul.mubr.bf16.gmra.mrb[0].mxu0 %v1425
    %v1723 = vpop.f32.mrb[0].mxu0
    %v1724 = vadd.f32 %v351, %v1723
    %v1725 = vpop.f32.mrb[0].mxu0
    %v1726 = vpop.f32.mrb[0].mxu0
    %v1727 = vadd.f32 %v354, %v1726
    %v1728 = vpop.f32.mrb[0].mxu0
    %1729 = vmatprep.mubr.bf16.mxu0 %v1430
    %1730 = vmatmul.mubr.bf16.gmra.mrb[0].mxu0 %v1429
    %v1731 = vpop.f32.mrb[0].mxu0
    %v1732 = vadd.f32 %v359, %v1731
    %v1733 = vpop.f32.mrb[0].mxu0
    %v1734 = vpop.f32.mrb[0].mxu0
    %v1735 = vadd.f32 %v362, %v1734
    %v1736 = vpop.f32.mrb[0].mxu0
    %1737 = vdwg.mxu0
    %1738 = vmatprep.subr.bf16.mxu0 0
    %1739 = vmatpush1.bf16.msra.mxu0 %v1641
    %1740 = vmatprep.subr.bf16.mxu0 0
    %1741 = vmatpush1.bf16.msra.mxu0 %v1642
    %1742 = vmatprep.subr.bf16.mxu0 0
    %1743 = vmatpush1.bf16.msra.mxu0 %v1643
    %1744 = vmatprep.subr.bf16.mxu0 0
    %1745 = vmatpush1.bf16.msra.mxu0 %v1644
    %1746 = vmatprep.subr.bf16.mxu0 0
    %1747 = vmatpush1.bf16.msra.mxu0 %v1645
    %1748 = vmatprep.subr.bf16.mxu0 0
    %1749 = vmatpush1.bf16.msra.mxu0 %v1646
    %1750 = vmatprep.subr.bf16.mxu0 0
    %1751 = vmatpush1.bf16.msra.mxu0 %v1647
    %1752 = vmatprep.subr.bf16.mxu0 0
    %1753 = vmatpush1.bf16.msra.mxu0 %v1648
    %1754 = vmatprep.subr.bf16.mxu0 0
    %1755 = vmatpush1.bf16.msra.mxu0 %v1649
    %1756 = vmatprep.subr.bf16.mxu0 0
    %1757 = vmatpush1.bf16.msra.mxu0 %v1650
    %1758 = vmatprep.subr.bf16.mxu0 0
    %1759 = vmatpush1.bf16.msra.mxu0 %v1651
    %1760 = vmatprep.subr.bf16.mxu0 0
    %1761 = vmatpush1.bf16.msra.mxu0 %v1652
    %1762 = vmatprep.subr.bf16.mxu0 0
    %1763 = vmatpush1.bf16.msra.mxu0 %v1653
    %1764 = vmatprep.subr.bf16.mxu0 0
    %1765 = vmatpush1.bf16.msra.mxu0 %v1654
    %1766 = vmatprep.subr.bf16.mxu0 0
    %1767 = vmatpush1.bf16.msra.mxu0 %v1655
    %1768 = vmatprep.subr.bf16.mxu0 0
    %1769 = vmatpush1.bf16.msra.mxu0 %v1656
    %1770 = vmatprep.mubr.bf16.mxu0 %v1428
    %1771 = vmatmul.mubr.bf16.gmra.mrb[0].mxu0 %v1427
    %v1772 = vpop.f32.mrb[0].mxu0
    %v1773 = vadd.f32 %v1724, %v1772
    %v1774 = vpop.f32.mrb[0].mxu0
    %v1775 = vpop.f32.mrb[0].mxu0
    %v1776 = vadd.f32 %v1727, %v1775
    %v1777 = vpop.f32.mrb[0].mxu0
    %1778 = vmatprep.mubr.bf16.mxu0 %v1432
    %1779 = vmatmul.mubr.bf16.gmra.mrb[0].mxu0 %v1431
    %v1780 = vpop.f32.mrb[0].mxu0
    %v1781 = vadd.f32 %v1732, %v1780
    %v1782 = vpop.f32.mrb[0].mxu0
    %v1783 = vpop.f32.mrb[0].mxu0
    %v1784 = vadd.f32 %v1735, %v1783
    %v1785 = vpop.f32.mrb[0].mxu0
    %1786 = vdwg.mxu0
    %v1787 = vld [vmem:[%s4] sm:$0x1]
    %v1789 = vlaneseq
    %v1790 = vshrl.u32 %v1789, 7
    %v1791 = vsub.s32 0, %v1790
    %v1792 = vrot.slane %v1787, %v1791
    %v1794 = vadd.f32 %v1773, %v1792
    %v1795 = vadd.f32 %v1776, %v1792
    %v1796 = vadd.f32 %v1781, %v1792
    %v1797 = vadd.f32 %v1784, %v1792
    %1798 = vst [vmem:[#allocation8] sm:$0xff] %v1794
    %1799 = vst [vmem:[#allocation8 + $0x8] sm:$0xff] %v1795
    %1800 = vst [vmem:[#allocation8 + $0x10] sm:$0xff] %v1796
    %1801 = vst [vmem:[#allocation8 + $0x18] sm:$0xff] %v1797
    // Predicated region
    $region42: #{tpu_custom_call.1} parent=1 // pred_check
      _
    $region43: #{tpu_custom_call.1} parent=1 // pred_check_branch
      %1803 = sbr.rel (0) target = $region45
    $region44: #{tpu_custom_call.1} parent=1 // pred_region
      %s1805 = ssub.s32 512, 512
      %1806 = vsyncadd [#allocation4], %s1805
      %s1807 = sshll.u32 [#allocation8], 4
      %s1808 = int_to_ptr.vmem [resolvable:$true] %s1807
      %1813 = dma.vmem_to_hbm [thread:$0]  %s1808, 512, %s7, [#allocation4], 128, 128, 8
    $region45: #{tpu_custom_call.1} parent=1 // pred_fallthru
      _
    // Predicated region
    $region46: #{tpu_custom_call.1} parent=1 // pred_check
      _
    $region47: #{tpu_custom_call.1} parent=1 // pred_check_branch
      %1815 = sbr.rel (0) target = $region49
    $region48: #{tpu_custom_call.1} parent=1 // pred_region
      %1816 = dma.done [#allocation4], 512
    $region49: #{tpu_custom_call.1} parent=1 // pred_fallthru
      _
    %1817 = vsyncpa [#allocation3], 1
    %1818 = vsyncpa [#allocation6], 1
    %1819 = vsyncpa [#allocation4], 1

</llo_original>
